<compile_context>
chip_gen: v5e
topology: v5e:2x2
jax: 0.10.0
libtpu: 0.0.40
codegen_flags: <defaults>
</compile_context>

<pallas_src>
import jax
import jax.numpy as jnp
from jax.experimental import pallas as pl
from jax.experimental.pallas import tpu as pltpu

SEQ_LEN = 128        # fixed tweet length after pad/truncate
EMBED_DIM = 300
VOCAB = 10001        # 10000 + 1
C = 128              # conv channels (= out channels)


def _stage_dims():
    """Per conv(k=3,s=2) + avgpool(k=3,s=2) stage: (L_in_padded, Lp_real, Lp_padded)."""
    dims = []
    l_real, l_pad = EMBED_DIM, EMBED_DIM
    for _ in range(3):
        lc = (l_real - 3) // 2 + 1
        lp = (lc - 3) // 2 + 1
        lpp = ((lp + 7) // 8) * 8            # sublane-aligned pooled length
        dims.append((l_pad, lp, lpp))
        l_real, l_pad = lp, lpp
    return dims                               # [(300,74,80), (80,17,24), (24,3,8)]


def _build_sel_masks():
    """Host-built 0/1 bf16 pooling masks, the 3 conv taps concatenated on rows.

    sel[k*Lpp + q, i] = 1 iff i in {4q+k, 4q+k+2, 4q+k+4} and q < Lp_real, so
    sel @ x yields the (unscaled) fused conv-stride-2 + avgpool3 row sums for
    every tap.  The exact-in-bf16 0/1 mask keeps the MXU operand bf16; the 1/3
    average is applied in f32 afterwards.  Padded rows (q >= Lp_real) are zero
    and indices never reach the padded (garbage) rows of the previous stage.
    """
    masks = []
    for (l_in, lp, lpp) in _stage_dims():
        q = jnp.arange(lpp)[:, None]
        i = jnp.arange(l_in)[None, :]
        taps = []
        for k in range(3):
            base = 4 * q + k
            m = ((i == base) | (i == base + 2) | (i == base + 4)) & (q < lp)
            taps.append(m)
        masks.append(jnp.concatenate(taps, axis=0).astype(jnp.bfloat16))
    return masks


def _cnn_kernel(x_ref, num_ref, sel1_ref, sel2_ref, sel3_ref,
                cw1_ref, cb1_ref, cw2_ref, cb2_ref, cw3_ref, cb3_ref,
                w1_ref, b1_ref, w2_ref, b2_ref, w3a_ref, w3b_ref, b3_ref,
                w4_ref, b4_ref, w5_ref, b5_ref, w6_ref, b6_ref, o_ref):
    f32, bf16 = jnp.float32, jnp.bfloat16
    bt = x_ref.shape[0]
    sel_refs = (sel1_ref, sel2_ref, sel3_ref)
    conv_w = (cw1_ref, cw2_ref, cw3_ref)
    conv_b = (cb1_ref, cb2_ref, cb3_ref)

    h = x_ref[...]                                        # (bt, 300, 128) bf16
    for s in range(3):
        sel = sel_refs[s][...]                            # (3*Lpp, L_in) bf16 0/1
        lpp = sel.shape[0] // 3
        # Pool first (reordered contraction).  Only this small bf16 dot is
        # per-example; taps are then laid out on the lane axis -> (bt*Lpp, 3C).
        parts = []
        for b in range(bt):
            pb = jnp.dot(sel, h[b], preferred_element_type=f32)      # (3*Lpp, C)
            parts.append(jnp.concatenate(
                [pb[0:lpp], pb[lpp:2 * lpp], pb[2 * lpp:3 * lpp]],
                axis=1).astype(bf16))                                 # (Lpp, 3C)
        pcat = jnp.concatenate(parts, axis=0)                         # (bt*Lpp, 3C) bf16
        # Batched 384-wide channel mix on the MXU; 1/3 average + bias on the VPU.
        acc = jnp.dot(pcat, conv_w[s][...], preferred_element_type=f32)
        acc = jnp.maximum(acc * (1.0 / 3.0) + conv_b[s][...], 0.0)    # f32
        if s < 2:
            h = acc.astype(bf16).reshape(bt, lpp, C)
        else:
            h = acc.reshape(bt, lpp, C)                               # keep f32

    # h: (bt, 8, 128) with real time steps in rows 0..2.  Torch's channel-major
    # flatten is matched by a column-permuted lin1 weight (see init_params).
    feat = jnp.concatenate([h[:, 0, :], h[:, 1, :], h[:, 2, :]],
                           axis=1).astype(bf16)                       # (bt, 384)

    def dense(z, w_ref, b_ref):
        return jnp.dot(z, w_ref[...], preferred_element_type=f32) + b_ref[...]

    z = jnp.maximum(dense(feat, w1_ref, b1_ref), 0.0).astype(bf16)    # (bt, 128)
    z = jnp.maximum(dense(z, w2_ref, b2_ref), 0.0).astype(bf16)       # (bt, 32)
    n = num_ref[...].reshape(bt, 8)                                   # bf16
    z = jnp.maximum(jnp.dot(z, w3a_ref[...], preferred_element_type=f32)
                    + jnp.dot(n, w3b_ref[...], preferred_element_type=f32)
                    + b3_ref[...], 0.0).astype(bf16)                  # (bt, 32)
    z = jnp.maximum(dense(z, w4_ref, b4_ref), 0.0).astype(bf16)       # (bt, 32)
    z = jnp.maximum(dense(z, w5_ref, b5_ref), 0.0).astype(bf16)       # (bt, 16)
    out = jnp.maximum(dense(z, w6_ref, b6_ref), 0.0)                  # (bt, 1) f32
    o_ref[...] = out.reshape(bt, 1, 1)


def _const_spec(a):
    zeros = (0,) * a.ndim
    return pl.BlockSpec(a.shape, lambda b, _z=zeros: _z)


@jax.jit
def cnn_forward(params, text, numeric):
    B, T = text.shape
    text = text.astype(jnp.int32)
    if T >= SEQ_LEN:
        text = text[:, :SEQ_LEN]
    else:
        text = jnp.concatenate(
            [text, jnp.zeros((B, SEQ_LEN - T), jnp.int32)], axis=1)

    # >=2 grid steps whenever B>=2 (keeps both v7x TensorCores busy), capped so
    # the per-example pooling unroll and VMEM footprint stay small everywhere.
    if B <= 1:
        bt = 1
    else:
        bt = min(16, (B + 1) // 2)
    Bp = ((B + bt - 1) // bt) * bt

    # Pad the cheap int32 token ids BEFORE the embedding gather (not the
    # (B,300,128) activation afterwards).
    if Bp != B:
        text = jnp.concatenate(
            [text, jnp.zeros((Bp - B, SEQ_LEN), jnp.int32)], axis=0)
        numeric = jnp.concatenate(
            [numeric, jnp.zeros((Bp - B, numeric.shape[1]), numeric.dtype)], axis=0)

    # TODO(synk): the data-dependent embedding gather stays in plain JAX; the
    # (B,128,300)->(B,300,128) layout change is left to XLA to fuse with it.
    emb = jnp.take(params["embed"], text, axis=0)         # (Bp, 128, 300) bf16
    x = jnp.swapaxes(emb, 1, 2)                           # (Bp, 300, 128) lane-dense channels
    num = numeric.astype(jnp.bfloat16).reshape(Bp, 1, 8)

    weight_args = (
        params["sel1"], params["sel2"], params["sel3"],
        params["conv1_w"], params["conv1_b"],
        params["conv2_w"], params["conv2_b"],
        params["conv3_w"], params["conv3_b"],
        params["lin1_w"], params["lin1_b"],
        params["lin2_w"], params["lin2_b"],
        params["lin3_wa"], params["lin3_wb"], params["lin3_b"],
        params["lin4_w"], params["lin4_b"],
        params["lin5_w"], params["lin5_b"],
        params["lin6_w"], params["lin6_b"],
    )

    # Advisory cost estimate for XLA scheduling around the custom call.
    flops_per_elem = 0
    for (l_in, _lp, lpp) in _stage_dims():
        flops_per_elem += 2 * (3 * lpp) * l_in * C        # pooling (bf16 mask dot)
        flops_per_elem += 2 * lpp * (3 * C) * C           # 384-wide channel mix
    flops_per_elem += 2 * (3 * C * C + C * 32 + 32 * 32 + 8 * 32
                           + 32 * 32 + 32 * 16 + 16)
    bytes_accessed = (x.size * x.dtype.itemsize + num.size * num.dtype.itemsize
                      + sum(int(w.size) * w.dtype.itemsize for w in weight_args)
                      + Bp * 4)

    out = pl.pallas_call(
        _cnn_kernel,
        out_shape=jax.ShapeDtypeStruct((Bp, 1, 1), jnp.float32),
        grid=(Bp // bt,),
        in_specs=[
            pl.BlockSpec((bt, EMBED_DIM, C), lambda b: (b, 0, 0)),
            pl.BlockSpec((bt, 1, 8), lambda b: (b, 0, 0)),
        ] + [_const_spec(w) for w in weight_args],
        out_specs=pl.BlockSpec((bt, 1, 1), lambda b: (b, 0, 0)),
        compiler_params=pltpu.CompilerParams(
            dimension_semantics=("parallel",),
            vmem_limit_bytes=32 * 1024 * 1024),
        cost_estimate=pl.CostEstimate(flops=Bp * flops_per_elem,
                                      transcendentals=0,
                                      bytes_accessed=bytes_accessed),
    )(x, num, *weight_args)
    return out.reshape(Bp, 1)[:B]


def init_params(key):
    keys = iter(jax.random.split(key, 24))

    def uniform(shape, fan_in):
        bound = 1.0 / (fan_in ** 0.5)
        return jax.random.uniform(next(keys), shape, jnp.float32, -bound, bound)

    p = {}
    # nn.Embedding default init ~ N(0, 1); stored bf16 to halve gather bytes.
    p["embed"] = jax.random.normal(
        next(keys), (VOCAB, EMBED_DIM), jnp.float32).astype(jnp.bfloat16)

    # Host-precomputed fused conv+avgpool selection masks (0/1, bf16).
    p["sel1"], p["sel2"], p["sel3"] = _build_sel_masks()

    for i in (1, 2, 3):
        w = uniform((C, C, 3), C * 3)            # torch Conv1d weight (out, in, k)
        b = uniform((C,), C * 3)
        # rows ordered (tap k, c_in) to match the pooled (.., 3*C) operand
        p[f"conv{i}_w"] = jnp.transpose(w, (2, 1, 0)).reshape(3 * C, C).astype(jnp.bfloat16)
        p[f"conv{i}_b"] = b.reshape(1, C)                                  # f32

    # lin1: torch (128, 384) with in-index = c*3 + l (channel-major flatten).
    # Kernel flattens time on the lane axis (col = l*128 + c): permute columns.
    w = uniform((C, 3 * C), 3 * C)
    b = uniform((C,), 3 * C)
    p["lin1_w"] = jnp.concatenate([w[:, l::3] for l in range(3)],
                                  axis=1).T.astype(jnp.bfloat16)           # (384, 128)
    p["lin1_b"] = b.reshape(1, C)

    w = uniform((32, C), C); b = uniform((32,), C)
    p["lin2_w"] = w.T.astype(jnp.bfloat16); p["lin2_b"] = b.reshape(1, 32)

    # lin3 acts on cat((h, numeric)): split its weight into the two operands.
    w = uniform((32, 40), 40); b = uniform((32,), 40)
    p["lin3_wa"] = w[:, :32].T.astype(jnp.bfloat16)
    p["lin3_wb"] = w[:, 32:].T.astype(jnp.bfloat16)
    p["lin3_b"] = b.reshape(1, 32)

    w = uniform((32, 32), 32); b = uniform((32,), 32)
    p["lin4_w"] = w.T.astype(jnp.bfloat16); p["lin4_b"] = b.reshape(1, 32)
    w = uniform((16, 32), 32); b = uniform((16,), 32)
    p["lin5_w"] = w.T.astype(jnp.bfloat16); p["lin5_b"] = b.reshape(1, 16)
    w = uniform((1, 16), 16); b = uniform((1,), 16)
    p["lin6_w"] = w.T.astype(jnp.bfloat16); p["lin6_b"] = b.reshape(1, 1)
    return p


if __name__ == "__main__":
    key = jax.random.PRNGKey(0)
    kp, kt, kn = jax.random.split(key, 3)
    params = init_params(kp)
    # batch=2, tweet length 50 (padded to 128 inside forward), 8 numeric features
    text = jax.random.randint(kt, (2, 50), 0, VOCAB, dtype=jnp.int32)
    numeric = jax.random.normal(kn, (2, 8), dtype=jnp.float32)

    out = cnn_forward(params, text, numeric)
    out = jax.block_until_ready(out)
    assert out.shape == (2, 1) and out.dtype == jnp.float32
    assert bool(jnp.all(jnp.isfinite(out)))
    print("KERNEL_OK")
</pallas_src>

<mosaic_0001>
module attributes {stable_mosaic.version = 11 : i64} {
  func.func @_cnn_kernel(%arg0: i32, %arg1: memref<1x300x128xbf16, #tpu.memory_space<vmem>>, %arg2: memref<1x1x8xbf16, #tpu.memory_space<vmem>>, %arg3: memref<240x300xbf16, #tpu.memory_space<vmem>>, %arg4: memref<72x80xbf16, #tpu.memory_space<vmem>>, %arg5: memref<24x24xbf16, #tpu.memory_space<vmem>>, %arg6: memref<384x128xbf16, #tpu.memory_space<vmem>>, %arg7: memref<1x128xf32, #tpu.memory_space<vmem>>, %arg8: memref<384x128xbf16, #tpu.memory_space<vmem>>, %arg9: memref<1x128xf32, #tpu.memory_space<vmem>>, %arg10: memref<384x128xbf16, #tpu.memory_space<vmem>>, %arg11: memref<1x128xf32, #tpu.memory_space<vmem>>, %arg12: memref<384x128xbf16, #tpu.memory_space<vmem>>, %arg13: memref<1x128xf32, #tpu.memory_space<vmem>>, %arg14: memref<128x32xbf16, #tpu.memory_space<vmem>>, %arg15: memref<1x32xf32, #tpu.memory_space<vmem>>, %arg16: memref<32x32xbf16, #tpu.memory_space<vmem>>, %arg17: memref<8x32xbf16, #tpu.memory_space<vmem>>, %arg18: memref<1x32xf32, #tpu.memory_space<vmem>>, %arg19: memref<32x32xbf16, #tpu.memory_space<vmem>>, %arg20: memref<1x32xf32, #tpu.memory_space<vmem>>, %arg21: memref<32x16xbf16, #tpu.memory_space<vmem>>, %arg22: memref<1x16xf32, #tpu.memory_space<vmem>>, %arg23: memref<16x1xbf16, #tpu.memory_space<vmem>>, %arg24: memref<1x1xf32, #tpu.memory_space<vmem>>, %arg25: memref<1x1x1xf32, #tpu.memory_space<vmem>>) attributes {dimension_semantics = [#tpu.dimension_semantics<parallel>], iteration_bounds = array<i64: 2>, scalar_prefetch = 0 : i64, scratch_operands = 0 : i64, tpu.core_type = #tpu.core_type<tc>, window_params = [{transform_indices = @transform_0, window_bounds = array<i64: 1, 300, 128>}, {transform_indices = @transform_1, window_bounds = array<i64: 1, 1, 8>}, {pipeline_mode = #tpu.pipeline_mode<synchronous>, transform_indices = @transform_2, window_bounds = array<i64: 240, 300>}, {pipeline_mode = #tpu.pipeline_mode<synchronous>, transform_indices = @transform_3, window_bounds = array<i64: 72, 80>}, {pipeline_mode = #tpu.pipeline_mode<synchronous>, transform_indices = @transform_4, window_bounds = array<i64: 24, 24>}, {pipeline_mode = #tpu.pipeline_mode<synchronous>, transform_indices = @transform_5, window_bounds = array<i64: 384, 128>}, {pipeline_mode = #tpu.pipeline_mode<synchronous>, transform_indices = @transform_6, window_bounds = array<i64: 1, 128>}, {pipeline_mode = #tpu.pipeline_mode<synchronous>, transform_indices = @transform_7, window_bounds = array<i64: 384, 128>}, {pipeline_mode = #tpu.pipeline_mode<synchronous>, transform_indices = @transform_8, window_bounds = array<i64: 1, 128>}, {pipeline_mode = #tpu.pipeline_mode<synchronous>, transform_indices = @transform_9, window_bounds = array<i64: 384, 128>}, {pipeline_mode = #tpu.pipeline_mode<synchronous>, transform_indices = @transform_10, window_bounds = array<i64: 1, 128>}, {pipeline_mode = #tpu.pipeline_mode<synchronous>, transform_indices = @transform_11, window_bounds = array<i64: 384, 128>}, {pipeline_mode = #tpu.pipeline_mode<synchronous>, transform_indices = @transform_12, window_bounds = array<i64: 1, 128>}, {pipeline_mode = #tpu.pipeline_mode<synchronous>, transform_indices = @transform_13, window_bounds = array<i64: 128, 32>}, {pipeline_mode = #tpu.pipeline_mode<synchronous>, transform_indices = @transform_14, window_bounds = array<i64: 1, 32>}, {pipeline_mode = #tpu.pipeline_mode<synchronous>, transform_indices = @transform_15, window_bounds = array<i64: 32, 32>}, {pipeline_mode = #tpu.pipeline_mode<synchronous>, transform_indices = @transform_16, window_bounds = array<i64: 8, 32>}, {pipeline_mode = #tpu.pipeline_mode<synchronous>, transform_indices = @transform_17, window_bounds = array<i64: 1, 32>}, {pipeline_mode = #tpu.pipeline_mode<synchronous>, transform_indices = @transform_18, window_bounds = array<i64: 32, 32>}, {pipeline_mode = #tpu.pipeline_mode<synchronous>, transform_indices = @transform_19, window_bounds = array<i64: 1, 32>}, {pipeline_mode = #tpu.pipeline_mode<synchronous>, transform_indices = @transform_20, window_bounds = array<i64: 32, 16>}, {pipeline_mode = #tpu.pipeline_mode<synchronous>, transform_indices = @transform_21, window_bounds = array<i64: 1, 16>}, {pipeline_mode = #tpu.pipeline_mode<synchronous>, transform_indices = @transform_22, window_bounds = array<i64: 16, 1>}, {pipeline_mode = #tpu.pipeline_mode<synchronous>, transform_indices = @transform_23, window_bounds = array<i64: 1, 1>}, {transform_indices = @transform_24, window_bounds = array<i64: 1, 1, 1>}]} {
    %c0 = arith.constant 0 : index
    %c0_0 = arith.constant 0 : index
    %c0_1 = arith.constant 0 : index
    %0 = vector.load %arg1[%c0, %c0_0, %c0_1] : memref<1x300x128xbf16, #tpu.memory_space<vmem>>, vector<1x300x128xbf16>
    %c0_2 = arith.constant 0 : index
    %c0_3 = arith.constant 0 : index
    %1 = vector.load %arg3[%c0_2, %c0_3] : memref<240x300xbf16, #tpu.memory_space<vmem>>, vector<240x300xbf16>
    %2 = vector.shape_cast %0 : vector<1x300x128xbf16> to vector<300x128xbf16>
    %cst = arith.constant dense<0.000000e+00> : vector<240x128xf32>
    %3 = tpu.matmul %1, %2, %cst {dimension_numbers = #tpu.dot_dimension_numbers<[1], [0], [0], [1], [0, 0, 1, 1], [], []>} : vector<240x300xbf16>, vector<300x128xbf16>, vector<240x128xf32> -> vector<240x128xf32>
    %4 = vector.extract_strided_slice %3 {offsets = [0, 0], sizes = [80, 128], strides = [1, 1]} : vector<240x128xf32> to vector<80x128xf32>
    %5 = vector.extract_strided_slice %3 {offsets = [80, 0], sizes = [80, 128], strides = [1, 1]} : vector<240x128xf32> to vector<80x128xf32>
    %6 = vector.extract_strided_slice %3 {offsets = [160, 0], sizes = [80, 128], strides = [1, 1]} : vector<240x128xf32> to vector<80x128xf32>
    %7 = tpu.concatenate %4, %5, %6 in 1 : vector<80x128xf32>, vector<80x128xf32>, vector<80x128xf32> -> vector<80x384xf32>
    %8 = arith.truncf %7 : vector<80x384xf32> to vector<80x384xbf16>
    %c0_4 = arith.constant 0 : index
    %c0_5 = arith.constant 0 : index
    %9 = vector.load %arg6[%c0_4, %c0_5] : memref<384x128xbf16, #tpu.memory_space<vmem>>, vector<384x128xbf16>
    %cst_6 = arith.constant dense<0.000000e+00> : vector<80x128xf32>
    %10 = tpu.matmul %8, %9, %cst_6 {dimension_numbers = #tpu.dot_dimension_numbers<[1], [0], [0], [1], [0, 0, 1, 1], [], []>} : vector<80x384xbf16>, vector<384x128xbf16>, vector<80x128xf32> -> vector<80x128xf32>
    %cst_7 = arith.constant 0.333333343 : f32
    %11 = vector.broadcast %cst_7 : f32 to vector<80x128xf32>
    %12 = arith.mulf %10, %11 : vector<80x128xf32>
    %c0_8 = arith.constant 0 : index
    %c0_9 = arith.constant 0 : index
    %13 = vector.load %arg7[%c0_8, %c0_9] : memref<1x128xf32, #tpu.memory_space<vmem>>, vector<1x128xf32>
    %14 = vector.broadcast %13 : vector<1x128xf32> to vector<80x128xf32>
    %15 = arith.addf %12, %14 : vector<80x128xf32>
    %cst_10 = arith.constant 0.000000e+00 : f32
    %16 = vector.broadcast %cst_10 : f32 to vector<80x128xf32>
    %17 = arith.maximumf %15, %16 : vector<80x128xf32>
    %18 = arith.truncf %17 : vector<80x128xf32> to vector<80x128xbf16>
    %19 = vector.shape_cast %18 : vector<80x128xbf16> to vector<1x80x128xbf16>
    %c0_11 = arith.constant 0 : index
    %c0_12 = arith.constant 0 : index
    %20 = vector.load %arg4[%c0_11, %c0_12] : memref<72x80xbf16, #tpu.memory_space<vmem>>, vector<72x80xbf16>
    %21 = vector.shape_cast %19 : vector<1x80x128xbf16> to vector<80x128xbf16>
    %cst_13 = arith.constant dense<0.000000e+00> : vector<72x128xf32>
    %22 = tpu.matmul %20, %21, %cst_13 {dimension_numbers = #tpu.dot_dimension_numbers<[1], [0], [0], [1], [0, 0, 1, 1], [], []>} : vector<72x80xbf16>, vector<80x128xbf16>, vector<72x128xf32> -> vector<72x128xf32>
    %23 = vector.extract_strided_slice %22 {offsets = [0, 0], sizes = [24, 128], strides = [1, 1]} : vector<72x128xf32> to vector<24x128xf32>
    %24 = vector.extract_strided_slice %22 {offsets = [24, 0], sizes = [24, 128], strides = [1, 1]} : vector<72x128xf32> to vector<24x128xf32>
    %25 = vector.extract_strided_slice %22 {offsets = [48, 0], sizes = [24, 128], strides = [1, 1]} : vector<72x128xf32> to vector<24x128xf32>
    %26 = tpu.concatenate %23, %24, %25 in 1 : vector<24x128xf32>, vector<24x128xf32>, vector<24x128xf32> -> vector<24x384xf32>
    %27 = arith.truncf %26 : vector<24x384xf32> to vector<24x384xbf16>
    %c0_14 = arith.constant 0 : index
    %c0_15 = arith.constant 0 : index
    %28 = vector.load %arg8[%c0_14, %c0_15] : memref<384x128xbf16, #tpu.memory_space<vmem>>, vector<384x128xbf16>
    %cst_16 = arith.constant dense<0.000000e+00> : vector<24x128xf32>
    %29 = tpu.matmul %27, %28, %cst_16 {dimension_numbers = #tpu.dot_dimension_numbers<[1], [0], [0], [1], [0, 0, 1, 1], [], []>} : vector<24x384xbf16>, vector<384x128xbf16>, vector<24x128xf32> -> vector<24x128xf32>
    %cst_17 = arith.constant 0.333333343 : f32
    %30 = vector.broadcast %cst_17 : f32 to vector<24x128xf32>
    %31 = arith.mulf %29, %30 : vector<24x128xf32>
    %c0_18 = arith.constant 0 : index
    %c0_19 = arith.constant 0 : index
    %32 = vector.load %arg9[%c0_18, %c0_19] : memref<1x128xf32, #tpu.memory_space<vmem>>, vector<1x128xf32>
    %33 = vector.broadcast %32 : vector<1x128xf32> to vector<24x128xf32>
    %34 = arith.addf %31, %33 : vector<24x128xf32>
    %cst_20 = arith.constant 0.000000e+00 : f32
    %35 = vector.broadcast %cst_20 : f32 to vector<24x128xf32>
    %36 = arith.maximumf %34, %35 : vector<24x128xf32>
    %37 = arith.truncf %36 : vector<24x128xf32> to vector<24x128xbf16>
    %38 = vector.shape_cast %37 : vector<24x128xbf16> to vector<1x24x128xbf16>
    %c0_21 = arith.constant 0 : index
    %c0_22 = arith.constant 0 : index
    %39 = vector.load %arg5[%c0_21, %c0_22] : memref<24x24xbf16, #tpu.memory_space<vmem>>, vector<24x24xbf16>
    %40 = vector.shape_cast %38 : vector<1x24x128xbf16> to vector<24x128xbf16>
    %cst_23 = arith.constant dense<0.000000e+00> : vector<24x128xf32>
    %41 = tpu.matmul %39, %40, %cst_23 {dimension_numbers = #tpu.dot_dimension_numbers<[1], [0], [0], [1], [0, 0, 1, 1], [], []>} : vector<24x24xbf16>, vector<24x128xbf16>, vector<24x128xf32> -> vector<24x128xf32>
    %42 = vector.extract_strided_slice %41 {offsets = [0, 0], sizes = [8, 128], strides = [1, 1]} : vector<24x128xf32> to vector<8x128xf32>
    %43 = vector.extract_strided_slice %41 {offsets = [8, 0], sizes = [8, 128], strides = [1, 1]} : vector<24x128xf32> to vector<8x128xf32>
    %44 = vector.extract_strided_slice %41 {offsets = [16, 0], sizes = [8, 128], strides = [1, 1]} : vector<24x128xf32> to vector<8x128xf32>
    %45 = tpu.concatenate %42, %43, %44 in 1 : vector<8x128xf32>, vector<8x128xf32>, vector<8x128xf32> -> vector<8x384xf32>
    %46 = arith.truncf %45 : vector<8x384xf32> to vector<8x384xbf16>
    %c0_24 = arith.constant 0 : index
    %c0_25 = arith.constant 0 : index
    %47 = vector.load %arg10[%c0_24, %c0_25] : memref<384x128xbf16, #tpu.memory_space<vmem>>, vector<384x128xbf16>
    %cst_26 = arith.constant dense<0.000000e+00> : vector<8x128xf32>
    %48 = tpu.matmul %46, %47, %cst_26 {dimension_numbers = #tpu.dot_dimension_numbers<[1], [0], [0], [1], [0, 0, 1, 1], [], []>} : vector<8x384xbf16>, vector<384x128xbf16>, vector<8x128xf32> -> vector<8x128xf32>
    %cst_27 = arith.constant 0.333333343 : f32
    %49 = vector.broadcast %cst_27 : f32 to vector<8x128xf32>
    %50 = arith.mulf %48, %49 : vector<8x128xf32>
    %c0_28 = arith.constant 0 : index
    %c0_29 = arith.constant 0 : index
    %51 = vector.load %arg11[%c0_28, %c0_29] : memref<1x128xf32, #tpu.memory_space<vmem>>, vector<1x128xf32>
    %52 = vector.broadcast %51 : vector<1x128xf32> to vector<8x128xf32>
    %53 = arith.addf %50, %52 : vector<8x128xf32>
    %cst_30 = arith.constant 0.000000e+00 : f32
    %54 = vector.broadcast %cst_30 : f32 to vector<8x128xf32>
    %55 = arith.maximumf %53, %54 : vector<8x128xf32>
    %56 = vector.shape_cast %55 : vector<8x128xf32> to vector<1x8x128xf32>
    %57 = vector.extract_strided_slice %56 {offsets = [0, 0, 0], sizes = [1, 1, 128], strides = [1, 1, 1]} : vector<1x8x128xf32> to vector<1x1x128xf32>
    %58 = vector.shape_cast %57 : vector<1x1x128xf32> to vector<1x128xf32>
    %59 = vector.extract_strided_slice %56 {offsets = [0, 1, 0], sizes = [1, 1, 128], strides = [1, 1, 1]} : vector<1x8x128xf32> to vector<1x1x128xf32>
    %60 = vector.shape_cast %59 : vector<1x1x128xf32> to vector<1x128xf32>
    %61 = vector.extract_strided_slice %56 {offsets = [0, 2, 0], sizes = [1, 1, 128], strides = [1, 1, 1]} : vector<1x8x128xf32> to vector<1x1x128xf32>
    %62 = vector.shape_cast %61 : vector<1x1x128xf32> to vector<1x128xf32>
    %63 = tpu.concatenate %58, %60, %62 in 1 : vector<1x128xf32>, vector<1x128xf32>, vector<1x128xf32> -> vector<1x384xf32>
    %64 = arith.truncf %63 : vector<1x384xf32> to vector<1x384xbf16>
    %c0_31 = arith.constant 0 : index
    %c0_32 = arith.constant 0 : index
    %65 = vector.load %arg12[%c0_31, %c0_32] : memref<384x128xbf16, #tpu.memory_space<vmem>>, vector<384x128xbf16>
    %cst_33 = arith.constant dense<0.000000e+00> : vector<1x128xf32>
    %66 = tpu.matmul %64, %65, %cst_33 {dimension_numbers = #tpu.dot_dimension_numbers<[1], [0], [0], [1], [0, 0, 1, 1], [], []>} : vector<1x384xbf16>, vector<384x128xbf16>, vector<1x128xf32> -> vector<1x128xf32>
    %c0_34 = arith.constant 0 : index
    %c0_35 = arith.constant 0 : index
    %67 = vector.load %arg13[%c0_34, %c0_35] : memref<1x128xf32, #tpu.memory_space<vmem>>, vector<1x128xf32>
    %68 = arith.addf %66, %67 : vector<1x128xf32>
    %cst_36 = arith.constant 0.000000e+00 : f32
    %69 = vector.broadcast %cst_36 : f32 to vector<1x128xf32>
    %70 = arith.maximumf %68, %69 : vector<1x128xf32>
    %71 = arith.truncf %70 : vector<1x128xf32> to vector<1x128xbf16>
    %c0_37 = arith.constant 0 : index
    %c0_38 = arith.constant 0 : index
    %72 = vector.load %arg14[%c0_37, %c0_38] : memref<128x32xbf16, #tpu.memory_space<vmem>>, vector<128x32xbf16>
    %cst_39 = arith.constant dense<0.000000e+00> : vector<1x32xf32>
    %73 = tpu.matmul %71, %72, %cst_39 {dimension_numbers = #tpu.dot_dimension_numbers<[1], [0], [0], [1], [0, 0, 1, 1], [], []>} : vector<1x128xbf16>, vector<128x32xbf16>, vector<1x32xf32> -> vector<1x32xf32>
    %c0_40 = arith.constant 0 : index
    %c0_41 = arith.constant 0 : index
    %74 = vector.load %arg15[%c0_40, %c0_41] : memref<1x32xf32, #tpu.memory_space<vmem>>, vector<1x32xf32>
    %75 = arith.addf %73, %74 : vector<1x32xf32>
    %cst_42 = arith.constant 0.000000e+00 : f32
    %76 = vector.broadcast %cst_42 : f32 to vector<1x32xf32>
    %77 = arith.maximumf %75, %76 : vector<1x32xf32>
    %78 = arith.truncf %77 : vector<1x32xf32> to vector<1x32xbf16>
    %c0_43 = arith.constant 0 : index
    %c0_44 = arith.constant 0 : index
    %c0_45 = arith.constant 0 : index
    %79 = vector.load %arg2[%c0_43, %c0_44, %c0_45] : memref<1x1x8xbf16, #tpu.memory_space<vmem>>, vector<1x1x8xbf16>
    %80 = vector.shape_cast %79 : vector<1x1x8xbf16> to vector<1x8xbf16>
    %c0_46 = arith.constant 0 : index
    %c0_47 = arith.constant 0 : index
    %81 = vector.load %arg16[%c0_46, %c0_47] : memref<32x32xbf16, #tpu.memory_space<vmem>>, vector<32x32xbf16>
    %cst_48 = arith.constant dense<0.000000e+00> : vector<1x32xf32>
    %82 = tpu.matmul %78, %81, %cst_48 {dimension_numbers = #tpu.dot_dimension_numbers<[1], [0], [0], [1], [0, 0, 1, 1], [], []>} : vector<1x32xbf16>, vector<32x32xbf16>, vector<1x32xf32> -> vector<1x32xf32>
    %c0_49 = arith.constant 0 : index
    %c0_50 = arith.constant 0 : index
    %83 = vector.load %arg17[%c0_49, %c0_50] : memref<8x32xbf16, #tpu.memory_space<vmem>>, vector<8x32xbf16>
    %cst_51 = arith.constant dense<0.000000e+00> : vector<1x32xf32>
    %84 = tpu.matmul %80, %83, %cst_51 {dimension_numbers = #tpu.dot_dimension_numbers<[1], [0], [0], [1], [0, 0, 1, 1], [], []>} : vector<1x8xbf16>, vector<8x32xbf16>, vector<1x32xf32> -> vector<1x32xf32>
    %85 = arith.addf %82, %84 : vector<1x32xf32>
    %c0_52 = arith.constant 0 : index
    %c0_53 = arith.constant 0 : index
    %86 = vector.load %arg18[%c0_52, %c0_53] : memref<1x32xf32, #tpu.memory_space<vmem>>, vector<1x32xf32>
    %87 = arith.addf %85, %86 : vector<1x32xf32>
    %cst_54 = arith.constant 0.000000e+00 : f32
    %88 = vector.broadcast %cst_54 : f32 to vector<1x32xf32>
    %89 = arith.maximumf %87, %88 : vector<1x32xf32>
    %90 = arith.truncf %89 : vector<1x32xf32> to vector<1x32xbf16>
    %c0_55 = arith.constant 0 : index
    %c0_56 = arith.constant 0 : index
    %91 = vector.load %arg19[%c0_55, %c0_56] : memref<32x32xbf16, #tpu.memory_space<vmem>>, vector<32x32xbf16>
    %cst_57 = arith.constant dense<0.000000e+00> : vector<1x32xf32>
    %92 = tpu.matmul %90, %91, %cst_57 {dimension_numbers = #tpu.dot_dimension_numbers<[1], [0], [0], [1], [0, 0, 1, 1], [], []>} : vector<1x32xbf16>, vector<32x32xbf16>, vector<1x32xf32> -> vector<1x32xf32>
    %c0_58 = arith.constant 0 : index
    %c0_59 = arith.constant 0 : index
    %93 = vector.load %arg20[%c0_58, %c0_59] : memref<1x32xf32, #tpu.memory_space<vmem>>, vector<1x32xf32>
    %94 = arith.addf %92, %93 : vector<1x32xf32>
    %cst_60 = arith.constant 0.000000e+00 : f32
    %95 = vector.broadcast %cst_60 : f32 to vector<1x32xf32>
    %96 = arith.maximumf %94, %95 : vector<1x32xf32>
    %97 = arith.truncf %96 : vector<1x32xf32> to vector<1x32xbf16>
    %c0_61 = arith.constant 0 : index
    %c0_62 = arith.constant 0 : index
    %98 = vector.load %arg21[%c0_61, %c0_62] : memref<32x16xbf16, #tpu.memory_space<vmem>>, vector<32x16xbf16>
    %cst_63 = arith.constant dense<0.000000e+00> : vector<1x16xf32>
    %99 = tpu.matmul %97, %98, %cst_63 {dimension_numbers = #tpu.dot_dimension_numbers<[1], [0], [0], [1], [0, 0, 1, 1], [], []>} : vector<1x32xbf16>, vector<32x16xbf16>, vector<1x16xf32> -> vector<1x16xf32>
    %c0_64 = arith.constant 0 : index
    %c0_65 = arith.constant 0 : index
    %100 = vector.load %arg22[%c0_64, %c0_65] : memref<1x16xf32, #tpu.memory_space<vmem>>, vector<1x16xf32>
    %101 = arith.addf %99, %100 : vector<1x16xf32>
    %cst_66 = arith.constant 0.000000e+00 : f32
    %102 = vector.broadcast %cst_66 : f32 to vector<1x16xf32>
    %103 = arith.maximumf %101, %102 : vector<1x16xf32>
    %104 = arith.truncf %103 : vector<1x16xf32> to vector<1x16xbf16>
    %c0_67 = arith.constant 0 : index
    %c0_68 = arith.constant 0 : index
    %105 = vector.load %arg23[%c0_67, %c0_68] : memref<16x1xbf16, #tpu.memory_space<vmem>>, vector<16x1xbf16>
    %cst_69 = arith.constant dense<0.000000e+00> : vector<1x1xf32>
    %106 = tpu.matmul %104, %105, %cst_69 {dimension_numbers = #tpu.dot_dimension_numbers<[1], [0], [0], [1], [0, 0, 1, 1], [], []>} : vector<1x16xbf16>, vector<16x1xbf16>, vector<1x1xf32> -> vector<1x1xf32>
    %c0_70 = arith.constant 0 : index
    %c0_71 = arith.constant 0 : index
    %107 = vector.load %arg24[%c0_70, %c0_71] : memref<1x1xf32, #tpu.memory_space<vmem>>, vector<1x1xf32>
    %108 = arith.addf %106, %107 : vector<1x1xf32>
    %cst_72 = arith.constant 0.000000e+00 : f32
    %109 = vector.broadcast %cst_72 : f32 to vector<1x1xf32>
    %110 = arith.maximumf %108, %109 : vector<1x1xf32>
    %111 = vector.shape_cast %110 : vector<1x1xf32> to vector<1x1x1xf32>
    %c0_73 = arith.constant 0 : index
    %c0_74 = arith.constant 0 : index
    %c0_75 = arith.constant 0 : index
    %112 = vector.load %arg25[%c0_73, %c0_74, %c0_75] : memref<1x1x1xf32, #tpu.memory_space<vmem>>, vector<1x1x1xf32>
    tpu.vector_store %arg25[%c0_73, %c0_74, %c0_75], %111 {strides = array<i32>} : memref<1x1x1xf32, #tpu.memory_space<vmem>>, vector<1x1x1xf32>,
    return
  }
  func.func @transform_0(%arg0: i32) -> (i32, i32, i32) {
    %c0_i32 = arith.constant 0 : i32
    %c0_i32_0 = arith.constant 0 : i32
    %c0_i32_1 = arith.constant 0 : i32
    return %arg0, %c0_i32, %c0_i32_0 : i32, i32, i32
  }
  func.func @transform_1(%arg0: i32) -> (i32, i32, i32) {
    %c0_i32 = arith.constant 0 : i32
    %c0_i32_0 = arith.constant 0 : i32
    %c0_i32_1 = arith.constant 0 : i32
    return %arg0, %c0_i32, %c0_i32_0 : i32, i32, i32
  }
  func.func @transform_2(%arg0: i32) -> (i32, i32) {
    %c0_i32 = arith.constant 0 : i32
    %c0_i32_0 = arith.constant 0 : i32
    %c0_i32_1 = arith.constant 0 : i32
    return %c0_i32, %c0_i32_0 : i32, i32
  }
  func.func @transform_3(%arg0: i32) -> (i32, i32) {
    %c0_i32 = arith.constant 0 : i32
    %c0_i32_0 = arith.constant 0 : i32
    %c0_i32_1 = arith.constant 0 : i32
    return %c0_i32, %c0_i32_0 : i32, i32
  }
  func.func @transform_4(%arg0: i32) -> (i32, i32) {
    %c0_i32 = arith.constant 0 : i32
    %c0_i32_0 = arith.constant 0 : i32
    %c0_i32_1 = arith.constant 0 : i32
    return %c0_i32, %c0_i32_0 : i32, i32
  }
  func.func @transform_5(%arg0: i32) -> (i32, i32) {
    %c0_i32 = arith.constant 0 : i32
    %c0_i32_0 = arith.constant 0 : i32
    %c0_i32_1 = arith.constant 0 : i32
    return %c0_i32, %c0_i32_0 : i32, i32
  }
  func.func @transform_6(%arg0: i32) -> (i32, i32) {
    %c0_i32 = arith.constant 0 : i32
    %c0_i32_0 = arith.constant 0 : i32
    %c0_i32_1 = arith.constant 0 : i32
    return %c0_i32, %c0_i32_0 : i32, i32
  }
  func.func @transform_7(%arg0: i32) -> (i32, i32) {
    %c0_i32 = arith.constant 0 : i32
    %c0_i32_0 = arith.constant 0 : i32
    %c0_i32_1 = arith.constant 0 : i32
    return %c0_i32, %c0_i32_0 : i32, i32
  }
  func.func @transform_8(%arg0: i32) -> (i32, i32) {
    %c0_i32 = arith.constant 0 : i32
    %c0_i32_0 = arith.constant 0 : i32
    %c0_i32_1 = arith.constant 0 : i32
    return %c0_i32, %c0_i32_0 : i32, i32
  }
  func.func @transform_9(%arg0: i32) -> (i32, i32) {
    %c0_i32 = arith.constant 0 : i32
    %c0_i32_0 = arith.constant 0 : i32
    %c0_i32_1 = arith.constant 0 : i32
    return %c0_i32, %c0_i32_0 : i32, i32
  }
  func.func @transform_10(%arg0: i32) -> (i32, i32) {
    %c0_i32 = arith.constant 0 : i32
    %c0_i32_0 = arith.constant 0 : i32
    %c0_i32_1 = arith.constant 0 : i32
    return %c0_i32, %c0_i32_0 : i32, i32
  }
  func.func @transform_11(%arg0: i32) -> (i32, i32) {
    %c0_i32 = arith.constant 0 : i32
    %c0_i32_0 = arith.constant 0 : i32
    %c0_i32_1 = arith.constant 0 : i32
    return %c0_i32, %c0_i32_0 : i32, i32
  }
  func.func @transform_12(%arg0: i32) -> (i32, i32) {
    %c0_i32 = arith.constant 0 : i32
    %c0_i32_0 = arith.constant 0 : i32
    %c0_i32_1 = arith.constant 0 : i32
    return %c0_i32, %c0_i32_0 : i32, i32
  }
  func.func @transform_13(%arg0: i32) -> (i32, i32) {
    %c0_i32 = arith.constant 0 : i32
    %c0_i32_0 = arith.constant 0 : i32
    %c0_i32_1 = arith.constant 0 : i32
    return %c0_i32, %c0_i32_0 : i32, i32
  }
  func.func @transform_14(%arg0: i32) -> (i32, i32) {
    %c0_i32 = arith.constant 0 : i32
    %c0_i32_0 = arith.constant 0 : i32
    %c0_i32_1 = arith.constant 0 : i32
    return %c0_i32, %c0_i32_0 : i32, i32
  }
  func.func @transform_15(%arg0: i32) -> (i32, i32) {
    %c0_i32 = arith.constant 0 : i32
    %c0_i32_0 = arith.constant 0 : i32
    %c0_i32_1 = arith.constant 0 : i32
    return %c0_i32, %c0_i32_0 : i32, i32
  }
  func.func @transform_16(%arg0: i32) -> (i32, i32) {
    %c0_i32 = arith.constant 0 : i32
    %c0_i32_0 = arith.constant 0 : i32
    %c0_i32_1 = arith.constant 0 : i32
    return %c0_i32, %c0_i32_0 : i32, i32
  }
  func.func @transform_17(%arg0: i32) -> (i32, i32) {
    %c0_i32 = arith.constant 0 : i32
    %c0_i32_0 = arith.constant 0 : i32
    %c0_i32_1 = arith.constant 0 : i32
    return %c0_i32, %c0_i32_0 : i32, i32
  }
  func.func @transform_18(%arg0: i32) -> (i32, i32) {
    %c0_i32 = arith.constant 0 : i32
    %c0_i32_0 = arith.constant 0 : i32
    %c0_i32_1 = arith.constant 0 : i32
    return %c0_i32, %c0_i32_0 : i32, i32
  }
  func.func @transform_19(%arg0: i32) -> (i32, i32) {
    %c0_i32 = arith.constant 0 : i32
    %c0_i32_0 = arith.constant 0 : i32
    %c0_i32_1 = arith.constant 0 : i32
    return %c0_i32, %c0_i32_0 : i32, i32
  }
  func.func @transform_20(%arg0: i32) -> (i32, i32) {
    %c0_i32 = arith.constant 0 : i32
    %c0_i32_0 = arith.constant 0 : i32
    %c0_i32_1 = arith.constant 0 : i32
    return %c0_i32, %c0_i32_0 : i32, i32
  }
  func.func @transform_21(%arg0: i32) -> (i32, i32) {
    %c0_i32 = arith.constant 0 : i32
    %c0_i32_0 = arith.constant 0 : i32
    %c0_i32_1 = arith.constant 0 : i32
    return %c0_i32, %c0_i32_0 : i32, i32
  }
  func.func @transform_22(%arg0: i32) -> (i32, i32) {
    %c0_i32 = arith.constant 0 : i32
    %c0_i32_0 = arith.constant 0 : i32
    %c0_i32_1 = arith.constant 0 : i32
    return %c0_i32, %c0_i32_0 : i32, i32
  }
  func.func @transform_23(%arg0: i32) -> (i32, i32) {
    %c0_i32 = arith.constant 0 : i32
    %c0_i32_0 = arith.constant 0 : i32
    %c0_i32_1 = arith.constant 0 : i32
    return %c0_i32, %c0_i32_0 : i32, i32
  }
  func.func @transform_24(%arg0: i32) -> (i32, i32, i32) {
    %c0_i32 = arith.constant 0 : i32
    %c0_i32_0 = arith.constant 0 : i32
    %c0_i32_1 = arith.constant 0 : i32
    return %arg0, %c0_i32, %c0_i32_0 : i32, i32, i32
  }
}

</mosaic_0001>

<llo_original>
// kernel: cnn_forward.1
$region0: #{cnn_forward.1}
  #allocation0 [shape = 'u32[]', space=smem, size = 0x4, offset = 0x4, fixed_abs, tag = 'smem constant byte address 0x4 - core index']
  #allocation1 [shape = 'u32[72,128]{1,0:T(1,128)}', space=vmem, size = 0x9000, scoped, tag = 'internal scratch']
  #allocation2 [shape = 'f32[1,1]{1,0:T(1,128)S(1)}', space=vmem, size = 0x200, scoped, tag = 'scoped memory for cnn_forward.1']
  %s0 = inlined_call_operand.vmem [shape: bf16[2,300,128], index: 0, kind: input, shape index: {}]
  %s1 = inlined_call_operand.vmem [shape: bf16[2,1,8], index: 1, kind: input, shape index: {}]
  %s2 = inlined_call_operand.vmem [shape: bf16[240,300], index: 2, kind: input, shape index: {}]
  %s3 = inlined_call_operand.vmem [shape: bf16[72,80], index: 3, kind: input, shape index: {}]
  %s4 = inlined_call_operand.vmem [shape: bf16[24,24], index: 4, kind: input, shape index: {}]
  %s5 = inlined_call_operand.vmem [shape: bf16[384,128], index: 5, kind: input, shape index: {}]
  %s6 = inlined_call_operand.vmem [shape: f32[1,128], index: 6, kind: input, shape index: {}]
  %s7 = inlined_call_operand.vmem [shape: bf16[384,128], index: 7, kind: input, shape index: {}]
  %s8 = inlined_call_operand.vmem [shape: f32[1,128], index: 8, kind: input, shape index: {}]
  %s9 = inlined_call_operand.vmem [shape: bf16[384,128], index: 9, kind: input, shape index: {}]
  %s10 = inlined_call_operand.vmem [shape: f32[1,128], index: 10, kind: input, shape index: {}]
  %s11 = inlined_call_operand.vmem [shape: bf16[384,128], index: 11, kind: input, shape index: {}]
  %s12 = inlined_call_operand.vmem [shape: f32[1,128], index: 12, kind: input, shape index: {}]
  %s13 = inlined_call_operand.vmem [shape: bf16[128,32], index: 13, kind: input, shape index: {}]
  %s14 = inlined_call_operand.vmem [shape: f32[1,32], index: 14, kind: input, shape index: {}]
  %s15 = inlined_call_operand.vmem [shape: bf16[32,32], index: 15, kind: input, shape index: {}]
  %s16 = inlined_call_operand.vmem [shape: bf16[8,32], index: 16, kind: input, shape index: {}]
  %s17 = inlined_call_operand.vmem [shape: f32[1,32], index: 17, kind: input, shape index: {}]
  %s18 = inlined_call_operand.vmem [shape: bf16[32,32], index: 18, kind: input, shape index: {}]
  %s19 = inlined_call_operand.vmem [shape: f32[1,32], index: 19, kind: input, shape index: {}]
  %s20 = inlined_call_operand.vmem [shape: bf16[32,16], index: 20, kind: input, shape index: {}]
  %s21 = inlined_call_operand.vmem [shape: f32[1,16], index: 21, kind: input, shape index: {}]
  %s22 = inlined_call_operand.vmem [shape: bf16[16,1], index: 22, kind: input, shape index: {}]
  %s23 = inlined_call_operand.<no memory space> [shape: f32[1,1], index: 23, kind: input, shape index: {}]
  %s24 = inlined_call_operand.vmem [shape: f32[2,1,1], index: 24, kind: output, shape index: {}]
  %s25 = sld [smem:[#allocation0]]
  $region129: #{cnn_forward.1} parent=0
    _
  %s27 = ssub.s32 1, %s25
  %s28 = scalar_select 0, %s27, %s25
  %v29 = vstv %s23
  %30 = vst [vmem:[#allocation2] sm:$0x1] %v29
  loop: start=0, step=1, limit=4
  $region2: #{cnn_forward.1} parent=0 // loop_pre_header
    _
  $region3: #{cnn_forward.1} parent=0 // loop_header
    %s32 = sphi 0, %s36
    %p33 = scmp.ge.s32.totalorder %s32, 4
    %s42 = sphi 0, %s44
    %s45 = sphi 0, %s42
    %s46 = sphi 0, %s45
    %s62 = sphi 0, %s46
    %s68 = sphi 0, %s70
    %s71 = sphi 0, %s68
    %s72 = sphi 0, %s71
    %s88 = sphi 0, %s72
    %s92 = sphi 0, %s92
    %s94 = sphi 0, %s92
    %s95 = sphi 0, %s94
    %s109 = sphi 0, %s95
    %s113 = sphi 0, %s113
    %s115 = sphi 0, %s113
    %s116 = sphi 0, %s115
    %s130 = sphi 0, %s116
    %s134 = sphi 0, %s134
    %s136 = sphi 0, %s134
    %s137 = sphi 0, %s136
    %s151 = sphi 0, %s137
    %s155 = sphi 0, %s155
    %s157 = sphi 0, %s155
    %s158 = sphi 0, %s157
    %s172 = sphi 0, %s158
    %s176 = sphi 0, %s176
    %s178 = sphi 0, %s176
    %s179 = sphi 0, %s178
    %s193 = sphi 0, %s179
    %s197 = sphi 0, %s197
    %s199 = sphi 0, %s197
    %s200 = sphi 0, %s199
    %s214 = sphi 0, %s200
    %s218 = sphi 0, %s218
    %s220 = sphi 0, %s218
    %s221 = sphi 0, %s220
    %s235 = sphi 0, %s221
    %s239 = sphi 0, %s239
    %s241 = sphi 0, %s239
    %s242 = sphi 0, %s241
    %s256 = sphi 0, %s242
    %s260 = sphi 0, %s260
    %s262 = sphi 0, %s260
    %s263 = sphi 0, %s262
    %s277 = sphi 0, %s263
    %s281 = sphi 0, %s281
    %s283 = sphi 0, %s281
    %s284 = sphi 0, %s283
    %s298 = sphi 0, %s284
    %s302 = sphi 0, %s302
    %s304 = sphi 0, %s302
    %s305 = sphi 0, %s304
    %s319 = sphi 0, %s305
    %s323 = sphi 0, %s323
    %s325 = sphi 0, %s323
    %s326 = sphi 0, %s325
    %s340 = sphi 0, %s326
    %s344 = sphi 0, %s344
    %s346 = sphi 0, %s344
    %s347 = sphi 0, %s346
    %s361 = sphi 0, %s347
    %s365 = sphi 0, %s365
    %s367 = sphi 0, %s365
    %s368 = sphi 0, %s367
    %s382 = sphi 0, %s368
    %s386 = sphi 0, %s386
    %s388 = sphi 0, %s386
    %s389 = sphi 0, %s388
    %s403 = sphi 0, %s389
    %s407 = sphi 0, %s407
    %s409 = sphi 0, %s407
    %s410 = sphi 0, %s409
    %s424 = sphi 0, %s410
    %s428 = sphi 0, %s428
    %s430 = sphi 0, %s428
    %s431 = sphi 0, %s430
    %s445 = sphi 0, %s431
    %s449 = sphi 0, %s449
    %s451 = sphi 0, %s449
    %s452 = sphi 0, %s451
    %s466 = sphi 0, %s452
    %s470 = sphi 0, %s470
    %s472 = sphi 0, %s470
    %s473 = sphi 0, %s472
    %s487 = sphi 0, %s473
    %s491 = sphi 0, %s491
    %s493 = sphi 0, %s491
    %s494 = sphi 0, %s493
    %s508 = sphi 0, %s494
    %s512 = sphi 0, %s512
    %s514 = sphi 0, %s512
    %s515 = sphi 0, %s514
    %s529 = sphi 0, %s515
    %s533 = sphi 0, %s533
    %s535 = sphi 0, %s533
    %s536 = sphi 0, %s535
    %s550 = sphi 0, %s536
    %s556 = sphi 0, %s558
    %s559 = sphi 0, %s556
    %s560 = sphi 0, %s559
    %s576 = sphi 0, %s560
  $region4: #{cnn_forward.1} parent=0 // loop_header_branch
    %35 = sbr.rel (%p33) target = $region8
  $region5: #{cnn_forward.1} parent=0 // loop_body
    %s37 = ssub.s32 %s32, 1
    %s38 = ssub.s32 %s32, 2
    %s39 = sadd.s32 %s32, 1
    %s40 = ssub.s32 %s32, %s39
    %p41 = scmp.eq.s32.totalorder %s40, 0
    %s43 = sadd.s32 %s42, 1
    %s44 = scalar_select %p41, %s42, %s43
    %p47 = pneg %p41
    %p48 = scmp.eq.s32.totalorder %s32, 1
    %p49 = por %p47, %p48
    %p50 = scmp.ne.s32.totalorder %s42, %s45
    %p51 = scmp.eq.s32.totalorder %s32, 0
    %p52 = por %p50, %p51
    %p53 = scmp.ne.s32.totalorder %s42, %s45
    %p54 = scmp.eq.s32.totalorder %s37, 1
    %p55 = por %p53, %p54
    %p56 = scmp.ne.s32.totalorder %s45, %s46
    %p57 = scmp.eq.s32.totalorder %s37, 0
    %p58 = por %p56, %p57
    %p59 = scmp.ne.s32.totalorder %s45, %s46
    %p60 = scmp.eq.s32.totalorder %s38, 1
    %p61 = por %p59, %p60
    %p63 = scmp.ne.s32.totalorder %s46, %s62
    %p64 = scmp.eq.s32.totalorder %s38, 0
    %p65 = por %p63, %p64
    %s66 = ssub.s32 %s32, %s39
    %p67 = scmp.eq.s32.totalorder %s66, 0
    %s69 = sadd.s32 %s68, 1
    %s70 = scalar_select %p67, %s68, %s69
    %p73 = pneg %p67
    %p74 = scmp.eq.s32.totalorder %s32, 1
    %p75 = por %p73, %p74
    %p76 = scmp.ne.s32.totalorder %s68, %s71
    %p77 = scmp.eq.s32.totalorder %s32, 0
    %p78 = por %p76, %p77
    %p79 = scmp.ne.s32.totalorder %s68, %s71
    %p80 = scmp.eq.s32.totalorder %s37, 1
    %p81 = por %p79, %p80
    %p82 = scmp.ne.s32.totalorder %s71, %s72
    %p83 = scmp.eq.s32.totalorder %s37, 0
    %p84 = por %p82, %p83
    %p85 = scmp.ne.s32.totalorder %s71, %s72
    %p86 = scmp.eq.s32.totalorder %s38, 1
    %p87 = por %p85, %p86
    %p89 = scmp.ne.s32.totalorder %s72, %s88
    %p90 = scmp.eq.s32.totalorder %s38, 0
    %p91 = por %p89, %p90
    %s93 = sadd.s32 %s92, 1
    %p96 = scmp.eq.s32.totalorder %s32, 1
    %p97 = scmp.ne.s32.totalorder %s92, %s94
    %p98 = scmp.eq.s32.totalorder %s32, 0
    %p99 = por %p97, %p98
    %p100 = scmp.ne.s32.totalorder %s92, %s94
    %p101 = scmp.eq.s32.totalorder %s37, 1
    %p102 = por %p100, %p101
    %p103 = scmp.ne.s32.totalorder %s94, %s95
    %p104 = scmp.eq.s32.totalorder %s37, 0
    %p105 = por %p103, %p104
    %p106 = scmp.ne.s32.totalorder %s94, %s95
    %p107 = scmp.eq.s32.totalorder %s38, 1
    %p108 = por %p106, %p107
    %p110 = scmp.ne.s32.totalorder %s95, %s109
    %p111 = scmp.eq.s32.totalorder %s38, 0
    %p112 = por %p110, %p111
    %s114 = sadd.s32 %s113, 1
    %p117 = scmp.eq.s32.totalorder %s32, 1
    %p118 = scmp.ne.s32.totalorder %s113, %s115
    %p119 = scmp.eq.s32.totalorder %s32, 0
    %p120 = por %p118, %p119
    %p121 = scmp.ne.s32.totalorder %s113, %s115
    %p122 = scmp.eq.s32.totalorder %s37, 1
    %p123 = por %p121, %p122
    %p124 = scmp.ne.s32.totalorder %s115, %s116
    %p125 = scmp.eq.s32.totalorder %s37, 0
    %p126 = por %p124, %p125
    %p127 = scmp.ne.s32.totalorder %s115, %s116
    %p128 = scmp.eq.s32.totalorder %s38, 1
    %p129 = por %p127, %p128
    %p131 = scmp.ne.s32.totalorder %s116, %s130
    %p132 = scmp.eq.s32.totalorder %s38, 0
    %p133 = por %p131, %p132
    %s135 = sadd.s32 %s134, 1
    %p138 = scmp.eq.s32.totalorder %s32, 1
    %p139 = scmp.ne.s32.totalorder %s134, %s136
    %p140 = scmp.eq.s32.totalorder %s32, 0
    %p141 = por %p139, %p140
    %p142 = scmp.ne.s32.totalorder %s134, %s136
    %p143 = scmp.eq.s32.totalorder %s37, 1
    %p144 = por %p142, %p143
    %p145 = scmp.ne.s32.totalorder %s136, %s137
    %p146 = scmp.eq.s32.totalorder %s37, 0
    %p147 = por %p145, %p146
    %p148 = scmp.ne.s32.totalorder %s136, %s137
    %p149 = scmp.eq.s32.totalorder %s38, 1
    %p150 = por %p148, %p149
    %p152 = scmp.ne.s32.totalorder %s137, %s151
    %p153 = scmp.eq.s32.totalorder %s38, 0
    %p154 = por %p152, %p153
    %s156 = sadd.s32 %s155, 1
    %p159 = scmp.eq.s32.totalorder %s32, 1
    %p160 = scmp.ne.s32.totalorder %s155, %s157
    %p161 = scmp.eq.s32.totalorder %s32, 0
    %p162 = por %p160, %p161
    %p163 = scmp.ne.s32.totalorder %s155, %s157
    %p164 = scmp.eq.s32.totalorder %s37, 1
    %p165 = por %p163, %p164
    %p166 = scmp.ne.s32.totalorder %s157, %s158
    %p167 = scmp.eq.s32.totalorder %s37, 0
    %p168 = por %p166, %p167
    %p169 = scmp.ne.s32.totalorder %s157, %s158
    %p170 = scmp.eq.s32.totalorder %s38, 1
    %p171 = por %p169, %p170
    %p173 = scmp.ne.s32.totalorder %s158, %s172
    %p174 = scmp.eq.s32.totalorder %s38, 0
    %p175 = por %p173, %p174
    %s177 = sadd.s32 %s176, 1
    %p180 = scmp.eq.s32.totalorder %s32, 1
    %p181 = scmp.ne.s32.totalorder %s176, %s178
    %p182 = scmp.eq.s32.totalorder %s32, 0
    %p183 = por %p181, %p182
    %p184 = scmp.ne.s32.totalorder %s176, %s178
    %p185 = scmp.eq.s32.totalorder %s37, 1
    %p186 = por %p184, %p185
    %p187 = scmp.ne.s32.totalorder %s178, %s179
    %p188 = scmp.eq.s32.totalorder %s37, 0
    %p189 = por %p187, %p188
    %p190 = scmp.ne.s32.totalorder %s178, %s179
    %p191 = scmp.eq.s32.totalorder %s38, 1
    %p192 = por %p190, %p191
    %p194 = scmp.ne.s32.totalorder %s179, %s193
    %p195 = scmp.eq.s32.totalorder %s38, 0
    %p196 = por %p194, %p195
    %s198 = sadd.s32 %s197, 1
    %p201 = scmp.eq.s32.totalorder %s32, 1
    %p202 = scmp.ne.s32.totalorder %s197, %s199
    %p203 = scmp.eq.s32.totalorder %s32, 0
    %p204 = por %p202, %p203
    %p205 = scmp.ne.s32.totalorder %s197, %s199
    %p206 = scmp.eq.s32.totalorder %s37, 1
    %p207 = por %p205, %p206
    %p208 = scmp.ne.s32.totalorder %s199, %s200
    %p209 = scmp.eq.s32.totalorder %s37, 0
    %p210 = por %p208, %p209
    %p211 = scmp.ne.s32.totalorder %s199, %s200
    %p212 = scmp.eq.s32.totalorder %s38, 1
    %p213 = por %p211, %p212
    %p215 = scmp.ne.s32.totalorder %s200, %s214
    %p216 = scmp.eq.s32.totalorder %s38, 0
    %p217 = por %p215, %p216
    %s219 = sadd.s32 %s218, 1
    %p222 = scmp.eq.s32.totalorder %s32, 1
    %p223 = scmp.ne.s32.totalorder %s218, %s220
    %p224 = scmp.eq.s32.totalorder %s32, 0
    %p225 = por %p223, %p224
    %p226 = scmp.ne.s32.totalorder %s218, %s220
    %p227 = scmp.eq.s32.totalorder %s37, 1
    %p228 = por %p226, %p227
    %p229 = scmp.ne.s32.totalorder %s220, %s221
    %p230 = scmp.eq.s32.totalorder %s37, 0
    %p231 = por %p229, %p230
    %p232 = scmp.ne.s32.totalorder %s220, %s221
    %p233 = scmp.eq.s32.totalorder %s38, 1
    %p234 = por %p232, %p233
    %p236 = scmp.ne.s32.totalorder %s221, %s235
    %p237 = scmp.eq.s32.totalorder %s38, 0
    %p238 = por %p236, %p237
    %s240 = sadd.s32 %s239, 1
    %p243 = scmp.eq.s32.totalorder %s32, 1
    %p244 = scmp.ne.s32.totalorder %s239, %s241
    %p245 = scmp.eq.s32.totalorder %s32, 0
    %p246 = por %p244, %p245
    %p247 = scmp.ne.s32.totalorder %s239, %s241
    %p248 = scmp.eq.s32.totalorder %s37, 1
    %p249 = por %p247, %p248
    %p250 = scmp.ne.s32.totalorder %s241, %s242
    %p251 = scmp.eq.s32.totalorder %s37, 0
    %p252 = por %p250, %p251
    %p253 = scmp.ne.s32.totalorder %s241, %s242
    %p254 = scmp.eq.s32.totalorder %s38, 1
    %p255 = por %p253, %p254
    %p257 = scmp.ne.s32.totalorder %s242, %s256
    %p258 = scmp.eq.s32.totalorder %s38, 0
    %p259 = por %p257, %p258
    %s261 = sadd.s32 %s260, 1
    %p264 = scmp.eq.s32.totalorder %s32, 1
    %p265 = scmp.ne.s32.totalorder %s260, %s262
    %p266 = scmp.eq.s32.totalorder %s32, 0
    %p267 = por %p265, %p266
    %p268 = scmp.ne.s32.totalorder %s260, %s262
    %p269 = scmp.eq.s32.totalorder %s37, 1
    %p270 = por %p268, %p269
    %p271 = scmp.ne.s32.totalorder %s262, %s263
    %p272 = scmp.eq.s32.totalorder %s37, 0
    %p273 = por %p271, %p272
    %p274 = scmp.ne.s32.totalorder %s262, %s263
    %p275 = scmp.eq.s32.totalorder %s38, 1
    %p276 = por %p274, %p275
    %p278 = scmp.ne.s32.totalorder %s263, %s277
    %p279 = scmp.eq.s32.totalorder %s38, 0
    %p280 = por %p278, %p279
    %s282 = sadd.s32 %s281, 1
    %p285 = scmp.eq.s32.totalorder %s32, 1
    %p286 = scmp.ne.s32.totalorder %s281, %s283
    %p287 = scmp.eq.s32.totalorder %s32, 0
    %p288 = por %p286, %p287
    %p289 = scmp.ne.s32.totalorder %s281, %s283
    %p290 = scmp.eq.s32.totalorder %s37, 1
    %p291 = por %p289, %p290
    %p292 = scmp.ne.s32.totalorder %s283, %s284
    %p293 = scmp.eq.s32.totalorder %s37, 0
    %p294 = por %p292, %p293
    %p295 = scmp.ne.s32.totalorder %s283, %s284
    %p296 = scmp.eq.s32.totalorder %s38, 1
    %p297 = por %p295, %p296
    %p299 = scmp.ne.s32.totalorder %s284, %s298
    %p300 = scmp.eq.s32.totalorder %s38, 0
    %p301 = por %p299, %p300
    %s303 = sadd.s32 %s302, 1
    %p306 = scmp.eq.s32.totalorder %s32, 1
    %p307 = scmp.ne.s32.totalorder %s302, %s304
    %p308 = scmp.eq.s32.totalorder %s32, 0
    %p309 = por %p307, %p308
    %p310 = scmp.ne.s32.totalorder %s302, %s304
    %p311 = scmp.eq.s32.totalorder %s37, 1
    %p312 = por %p310, %p311
    %p313 = scmp.ne.s32.totalorder %s304, %s305
    %p314 = scmp.eq.s32.totalorder %s37, 0
    %p315 = por %p313, %p314
    %p316 = scmp.ne.s32.totalorder %s304, %s305
    %p317 = scmp.eq.s32.totalorder %s38, 1
    %p318 = por %p316, %p317
    %p320 = scmp.ne.s32.totalorder %s305, %s319
    %p321 = scmp.eq.s32.totalorder %s38, 0
    %p322 = por %p320, %p321
    %s324 = sadd.s32 %s323, 1
    %p327 = scmp.eq.s32.totalorder %s32, 1
    %p328 = scmp.ne.s32.totalorder %s323, %s325
    %p329 = scmp.eq.s32.totalorder %s32, 0
    %p330 = por %p328, %p329
    %p331 = scmp.ne.s32.totalorder %s323, %s325
    %p332 = scmp.eq.s32.totalorder %s37, 1
    %p333 = por %p331, %p332
    %p334 = scmp.ne.s32.totalorder %s325, %s326
    %p335 = scmp.eq.s32.totalorder %s37, 0
    %p336 = por %p334, %p335
    %p337 = scmp.ne.s32.totalorder %s325, %s326
    %p338 = scmp.eq.s32.totalorder %s38, 1
    %p339 = por %p337, %p338
    %p341 = scmp.ne.s32.totalorder %s326, %s340
    %p342 = scmp.eq.s32.totalorder %s38, 0
    %p343 = por %p341, %p342
    %s345 = sadd.s32 %s344, 1
    %p348 = scmp.eq.s32.totalorder %s32, 1
    %p349 = scmp.ne.s32.totalorder %s344, %s346
    %p350 = scmp.eq.s32.totalorder %s32, 0
    %p351 = por %p349, %p350
    %p352 = scmp.ne.s32.totalorder %s344, %s346
    %p353 = scmp.eq.s32.totalorder %s37, 1
    %p354 = por %p352, %p353
    %p355 = scmp.ne.s32.totalorder %s346, %s347
    %p356 = scmp.eq.s32.totalorder %s37, 0
    %p357 = por %p355, %p356
    %p358 = scmp.ne.s32.totalorder %s346, %s347
    %p359 = scmp.eq.s32.totalorder %s38, 1
    %p360 = por %p358, %p359
    %p362 = scmp.ne.s32.totalorder %s347, %s361
    %p363 = scmp.eq.s32.totalorder %s38, 0
    %p364 = por %p362, %p363
    %s366 = sadd.s32 %s365, 1
    %p369 = scmp.eq.s32.totalorder %s32, 1
    %p370 = scmp.ne.s32.totalorder %s365, %s367
    %p371 = scmp.eq.s32.totalorder %s32, 0
    %p372 = por %p370, %p371
    %p373 = scmp.ne.s32.totalorder %s365, %s367
    %p374 = scmp.eq.s32.totalorder %s37, 1
    %p375 = por %p373, %p374
    %p376 = scmp.ne.s32.totalorder %s367, %s368
    %p377 = scmp.eq.s32.totalorder %s37, 0
    %p378 = por %p376, %p377
    %p379 = scmp.ne.s32.totalorder %s367, %s368
    %p380 = scmp.eq.s32.totalorder %s38, 1
    %p381 = por %p379, %p380
    %p383 = scmp.ne.s32.totalorder %s368, %s382
    %p384 = scmp.eq.s32.totalorder %s38, 0
    %p385 = por %p383, %p384
    %s387 = sadd.s32 %s386, 1
    %p390 = scmp.eq.s32.totalorder %s32, 1
    %p391 = scmp.ne.s32.totalorder %s386, %s388
    %p392 = scmp.eq.s32.totalorder %s32, 0
    %p393 = por %p391, %p392
    %p394 = scmp.ne.s32.totalorder %s386, %s388
    %p395 = scmp.eq.s32.totalorder %s37, 1
    %p396 = por %p394, %p395
    %p397 = scmp.ne.s32.totalorder %s388, %s389
    %p398 = scmp.eq.s32.totalorder %s37, 0
    %p399 = por %p397, %p398
    %p400 = scmp.ne.s32.totalorder %s388, %s389
    %p401 = scmp.eq.s32.totalorder %s38, 1
    %p402 = por %p400, %p401
    %p404 = scmp.ne.s32.totalorder %s389, %s403
    %p405 = scmp.eq.s32.totalorder %s38, 0
    %p406 = por %p404, %p405
    %s408 = sadd.s32 %s407, 1
    %p411 = scmp.eq.s32.totalorder %s32, 1
    %p412 = scmp.ne.s32.totalorder %s407, %s409
    %p413 = scmp.eq.s32.totalorder %s32, 0
    %p414 = por %p412, %p413
    %p415 = scmp.ne.s32.totalorder %s407, %s409
    %p416 = scmp.eq.s32.totalorder %s37, 1
    %p417 = por %p415, %p416
    %p418 = scmp.ne.s32.totalorder %s409, %s410
    %p419 = scmp.eq.s32.totalorder %s37, 0
    %p420 = por %p418, %p419
    %p421 = scmp.ne.s32.totalorder %s409, %s410
    %p422 = scmp.eq.s32.totalorder %s38, 1
    %p423 = por %p421, %p422
    %p425 = scmp.ne.s32.totalorder %s410, %s424
    %p426 = scmp.eq.s32.totalorder %s38, 0
    %p427 = por %p425, %p426
    %s429 = sadd.s32 %s428, 1
    %p432 = scmp.eq.s32.totalorder %s32, 1
    %p433 = scmp.ne.s32.totalorder %s428, %s430
    %p434 = scmp.eq.s32.totalorder %s32, 0
    %p435 = por %p433, %p434
    %p436 = scmp.ne.s32.totalorder %s428, %s430
    %p437 = scmp.eq.s32.totalorder %s37, 1
    %p438 = por %p436, %p437
    %p439 = scmp.ne.s32.totalorder %s430, %s431
    %p440 = scmp.eq.s32.totalorder %s37, 0
    %p441 = por %p439, %p440
    %p442 = scmp.ne.s32.totalorder %s430, %s431
    %p443 = scmp.eq.s32.totalorder %s38, 1
    %p444 = por %p442, %p443
    %p446 = scmp.ne.s32.totalorder %s431, %s445
    %p447 = scmp.eq.s32.totalorder %s38, 0
    %p448 = por %p446, %p447
    %s450 = sadd.s32 %s449, 1
    %p453 = scmp.eq.s32.totalorder %s32, 1
    %p454 = scmp.ne.s32.totalorder %s449, %s451
    %p455 = scmp.eq.s32.totalorder %s32, 0
    %p456 = por %p454, %p455
    %p457 = scmp.ne.s32.totalorder %s449, %s451
    %p458 = scmp.eq.s32.totalorder %s37, 1
    %p459 = por %p457, %p458
    %p460 = scmp.ne.s32.totalorder %s451, %s452
    %p461 = scmp.eq.s32.totalorder %s37, 0
    %p462 = por %p460, %p461
    %p463 = scmp.ne.s32.totalorder %s451, %s452
    %p464 = scmp.eq.s32.totalorder %s38, 1
    %p465 = por %p463, %p464
    %p467 = scmp.ne.s32.totalorder %s452, %s466
    %p468 = scmp.eq.s32.totalorder %s38, 0
    %p469 = por %p467, %p468
    %s471 = sadd.s32 %s470, 1
    %p474 = scmp.eq.s32.totalorder %s32, 1
    %p475 = scmp.ne.s32.totalorder %s470, %s472
    %p476 = scmp.eq.s32.totalorder %s32, 0
    %p477 = por %p475, %p476
    %p478 = scmp.ne.s32.totalorder %s470, %s472
    %p479 = scmp.eq.s32.totalorder %s37, 1
    %p480 = por %p478, %p479
    %p481 = scmp.ne.s32.totalorder %s472, %s473
    %p482 = scmp.eq.s32.totalorder %s37, 0
    %p483 = por %p481, %p482
    %p484 = scmp.ne.s32.totalorder %s472, %s473
    %p485 = scmp.eq.s32.totalorder %s38, 1
    %p486 = por %p484, %p485
    %p488 = scmp.ne.s32.totalorder %s473, %s487
    %p489 = scmp.eq.s32.totalorder %s38, 0
    %p490 = por %p488, %p489
    %s492 = sadd.s32 %s491, 1
    %p495 = scmp.eq.s32.totalorder %s32, 1
    %p496 = scmp.ne.s32.totalorder %s491, %s493
    %p497 = scmp.eq.s32.totalorder %s32, 0
    %p498 = por %p496, %p497
    %p499 = scmp.ne.s32.totalorder %s491, %s493
    %p500 = scmp.eq.s32.totalorder %s37, 1
    %p501 = por %p499, %p500
    %p502 = scmp.ne.s32.totalorder %s493, %s494
    %p503 = scmp.eq.s32.totalorder %s37, 0
    %p504 = por %p502, %p503
    %p505 = scmp.ne.s32.totalorder %s493, %s494
    %p506 = scmp.eq.s32.totalorder %s38, 1
    %p507 = por %p505, %p506
    %p509 = scmp.ne.s32.totalorder %s494, %s508
    %p510 = scmp.eq.s32.totalorder %s38, 0
    %p511 = por %p509, %p510
    %s513 = sadd.s32 %s512, 1
    %p516 = scmp.eq.s32.totalorder %s32, 1
    %p517 = scmp.ne.s32.totalorder %s512, %s514
    %p518 = scmp.eq.s32.totalorder %s32, 0
    %p519 = por %p517, %p518
    %p520 = scmp.ne.s32.totalorder %s512, %s514
    %p521 = scmp.eq.s32.totalorder %s37, 1
    %p522 = por %p520, %p521
    %p523 = scmp.ne.s32.totalorder %s514, %s515
    %p524 = scmp.eq.s32.totalorder %s37, 0
    %p525 = por %p523, %p524
    %p526 = scmp.ne.s32.totalorder %s514, %s515
    %p527 = scmp.eq.s32.totalorder %s38, 1
    %p528 = por %p526, %p527
    %p530 = scmp.ne.s32.totalorder %s515, %s529
    %p531 = scmp.eq.s32.totalorder %s38, 0
    %p532 = por %p530, %p531
    %s534 = sadd.s32 %s533, 1
    %p537 = scmp.eq.s32.totalorder %s32, 1
    %p538 = scmp.ne.s32.totalorder %s533, %s535
    %p539 = scmp.eq.s32.totalorder %s32, 0
    %p540 = por %p538, %p539
    %p541 = scmp.ne.s32.totalorder %s533, %s535
    %p542 = scmp.eq.s32.totalorder %s37, 1
    %p543 = por %p541, %p542
    %p544 = scmp.ne.s32.totalorder %s535, %s536
    %p545 = scmp.eq.s32.totalorder %s37, 0
    %p546 = por %p544, %p545
    %p547 = scmp.ne.s32.totalorder %s535, %s536
    %p548 = scmp.eq.s32.totalorder %s38, 1
    %p549 = por %p547, %p548
    %p551 = scmp.ne.s32.totalorder %s536, %s550
    %p552 = scmp.eq.s32.totalorder %s38, 0
    %p553 = por %p551, %p552
    %s554 = ssub.s32 %s32, %s39
    %p555 = scmp.eq.s32.totalorder %s554, 0
    %s557 = sadd.s32 %s556, 1
    %s558 = scalar_select %p555, %s556, %s557
    %p561 = pneg %p555
    %p562 = scmp.eq.s32.totalorder %s32, 1
    %p563 = por %p561, %p562
    %p564 = scmp.ne.s32.totalorder %s556, %s559
    %p565 = scmp.eq.s32.totalorder %s32, 0
    %p566 = por %p564, %p565
    %p567 = scmp.ne.s32.totalorder %s556, %s559
    %p568 = scmp.eq.s32.totalorder %s37, 1
    %p569 = por %p567, %p568
    %p570 = scmp.ne.s32.totalorder %s559, %s560
    %p571 = scmp.eq.s32.totalorder %s37, 0
    %p572 = por %p570, %p571
    %p573 = scmp.ne.s32.totalorder %s559, %s560
    %p574 = scmp.eq.s32.totalorder %s38, 1
    %p575 = por %p573, %p574
    %p577 = scmp.ne.s32.totalorder %s560, %s576
    %p578 = scmp.eq.s32.totalorder %s38, 0
    %p579 = por %p577, %p578
    %p580 = scmp.le.s32.totalorder 1, %s32
    %p581 = scmp.lt.s32.totalorder %s32, 3
    %p582 = pnand %p580, %p581
    %p583 = pneg %p582
    // Predicated region
    $region9: #{cnn_forward.1} parent=5 // pred_check
      _
    $region10: #{cnn_forward.1} parent=5 // pred_check_branch
      %585 = sbr.rel (%p582) target = $region12
    $region11: #{cnn_forward.1} parent=5 // pred_region
      %s586 = ssub.s32 %s32, 1
      // Predicated region
      $region13: #{cnn_forward.1} parent=11 // pred_check
        %p587 = pneg %p105
      $region14: #{cnn_forward.1} parent=11 // pred_check_branch
        %589 = sbr.rel (%p587) target = $region16
      $region15: #{cnn_forward.1} parent=11 // pred_region
        _
      $region16: #{cnn_forward.1} parent=11 // pred_fallthru
        _
      // Predicated region
      $region17: #{cnn_forward.1} parent=11 // pred_check
        %p590 = pneg %p126
      $region18: #{cnn_forward.1} parent=11 // pred_check_branch
        %592 = sbr.rel (%p590) target = $region20
      $region19: #{cnn_forward.1} parent=11 // pred_region
        _
      $region20: #{cnn_forward.1} parent=11 // pred_fallthru
        _
      // Predicated region
      $region21: #{cnn_forward.1} parent=11 // pred_check
        %p593 = pneg %p147
      $region22: #{cnn_forward.1} parent=11 // pred_check_branch
        %595 = sbr.rel (%p593) target = $region24
      $region23: #{cnn_forward.1} parent=11 // pred_region
        _
      $region24: #{cnn_forward.1} parent=11 // pred_fallthru
        _
      // Predicated region
      $region25: #{cnn_forward.1} parent=11 // pred_check
        %p596 = pneg %p168
      $region26: #{cnn_forward.1} parent=11 // pred_check_branch
        %598 = sbr.rel (%p596) target = $region28
      $region27: #{cnn_forward.1} parent=11 // pred_region
        _
      $region28: #{cnn_forward.1} parent=11 // pred_fallthru
        _
      // Predicated region
      $region29: #{cnn_forward.1} parent=11 // pred_check
        %p599 = pneg %p189
      $region30: #{cnn_forward.1} parent=11 // pred_check_branch
        %601 = sbr.rel (%p599) target = $region32
      $region31: #{cnn_forward.1} parent=11 // pred_region
        _
      $region32: #{cnn_forward.1} parent=11 // pred_fallthru
        _
      // Predicated region
      $region33: #{cnn_forward.1} parent=11 // pred_check
        %p602 = pneg %p210
      $region34: #{cnn_forward.1} parent=11 // pred_check_branch
        %604 = sbr.rel (%p602) target = $region36
      $region35: #{cnn_forward.1} parent=11 // pred_region
        _
      $region36: #{cnn_forward.1} parent=11 // pred_fallthru
        _
      // Predicated region
      $region37: #{cnn_forward.1} parent=11 // pred_check
        %p605 = pneg %p231
      $region38: #{cnn_forward.1} parent=11 // pred_check_branch
        %607 = sbr.rel (%p605) target = $region40
      $region39: #{cnn_forward.1} parent=11 // pred_region
        _
      $region40: #{cnn_forward.1} parent=11 // pred_fallthru
        _
      // Predicated region
      $region41: #{cnn_forward.1} parent=11 // pred_check
        %p608 = pneg %p252
      $region42: #{cnn_forward.1} parent=11 // pred_check_branch
        %610 = sbr.rel (%p608) target = $region44
      $region43: #{cnn_forward.1} parent=11 // pred_region
        _
      $region44: #{cnn_forward.1} parent=11 // pred_fallthru
        _
      // Predicated region
      $region45: #{cnn_forward.1} parent=11 // pred_check
        %p611 = pneg %p273
      $region46: #{cnn_forward.1} parent=11 // pred_check_branch
        %613 = sbr.rel (%p611) target = $region48
      $region47: #{cnn_forward.1} parent=11 // pred_region
        _
      $region48: #{cnn_forward.1} parent=11 // pred_fallthru
        _
      // Predicated region
      $region49: #{cnn_forward.1} parent=11 // pred_check
        %p614 = pneg %p294
      $region50: #{cnn_forward.1} parent=11 // pred_check_branch
        %616 = sbr.rel (%p614) target = $region52
      $region51: #{cnn_forward.1} parent=11 // pred_region
        _
      $region52: #{cnn_forward.1} parent=11 // pred_fallthru
        _
      // Predicated region
      $region53: #{cnn_forward.1} parent=11 // pred_check
        %p617 = pneg %p315
      $region54: #{cnn_forward.1} parent=11 // pred_check_branch
        %619 = sbr.rel (%p617) target = $region56
      $region55: #{cnn_forward.1} parent=11 // pred_region
        _
      $region56: #{cnn_forward.1} parent=11 // pred_fallthru
        _
      // Predicated region
      $region57: #{cnn_forward.1} parent=11 // pred_check
        %p620 = pneg %p336
      $region58: #{cnn_forward.1} parent=11 // pred_check_branch
        %622 = sbr.rel (%p620) target = $region60
      $region59: #{cnn_forward.1} parent=11 // pred_region
        _
      $region60: #{cnn_forward.1} parent=11 // pred_fallthru
        _
      // Predicated region
      $region61: #{cnn_forward.1} parent=11 // pred_check
        %p623 = pneg %p357
      $region62: #{cnn_forward.1} parent=11 // pred_check_branch
        %625 = sbr.rel (%p623) target = $region64
      $region63: #{cnn_forward.1} parent=11 // pred_region
        _
      $region64: #{cnn_forward.1} parent=11 // pred_fallthru
        _
      // Predicated region
      $region65: #{cnn_forward.1} parent=11 // pred_check
        %p626 = pneg %p378
      $region66: #{cnn_forward.1} parent=11 // pred_check_branch
        %628 = sbr.rel (%p626) target = $region68
      $region67: #{cnn_forward.1} parent=11 // pred_region
        _
      $region68: #{cnn_forward.1} parent=11 // pred_fallthru
        _
      // Predicated region
      $region69: #{cnn_forward.1} parent=11 // pred_check
        %p629 = pneg %p399
      $region70: #{cnn_forward.1} parent=11 // pred_check_branch
        %631 = sbr.rel (%p629) target = $region72
      $region71: #{cnn_forward.1} parent=11 // pred_region
        _
      $region72: #{cnn_forward.1} parent=11 // pred_fallthru
        _
      // Predicated region
      $region73: #{cnn_forward.1} parent=11 // pred_check
        %p632 = pneg %p420
      $region74: #{cnn_forward.1} parent=11 // pred_check_branch
        %634 = sbr.rel (%p632) target = $region76
      $region75: #{cnn_forward.1} parent=11 // pred_region
        _
      $region76: #{cnn_forward.1} parent=11 // pred_fallthru
        _
      // Predicated region
      $region77: #{cnn_forward.1} parent=11 // pred_check
        %p635 = pneg %p441
      $region78: #{cnn_forward.1} parent=11 // pred_check_branch
        %637 = sbr.rel (%p635) target = $region80
      $region79: #{cnn_forward.1} parent=11 // pred_region
        _
      $region80: #{cnn_forward.1} parent=11 // pred_fallthru
        _
      // Predicated region
      $region81: #{cnn_forward.1} parent=11 // pred_check
        %p638 = pneg %p462
      $region82: #{cnn_forward.1} parent=11 // pred_check_branch
        %640 = sbr.rel (%p638) target = $region84
      $region83: #{cnn_forward.1} parent=11 // pred_region
        _
      $region84: #{cnn_forward.1} parent=11 // pred_fallthru
        _
      // Predicated region
      $region85: #{cnn_forward.1} parent=11 // pred_check
        %p641 = pneg %p483
      $region86: #{cnn_forward.1} parent=11 // pred_check_branch
        %643 = sbr.rel (%p641) target = $region88
      $region87: #{cnn_forward.1} parent=11 // pred_region
        _
      $region88: #{cnn_forward.1} parent=11 // pred_fallthru
        _
      // Predicated region
      $region89: #{cnn_forward.1} parent=11 // pred_check
        %p644 = pneg %p504
      $region90: #{cnn_forward.1} parent=11 // pred_check_branch
        %646 = sbr.rel (%p644) target = $region92
      $region91: #{cnn_forward.1} parent=11 // pred_region
        _
      $region92: #{cnn_forward.1} parent=11 // pred_fallthru
        _
      // Predicated region
      $region93: #{cnn_forward.1} parent=11 // pred_check
        %p647 = pneg %p525
      $region94: #{cnn_forward.1} parent=11 // pred_check_branch
        %649 = sbr.rel (%p647) target = $region96
      $region95: #{cnn_forward.1} parent=11 // pred_region
        _
      $region96: #{cnn_forward.1} parent=11 // pred_fallthru
        _
      // Predicated region
      $region97: #{cnn_forward.1} parent=11 // pred_check
        %p650 = pneg %p546
      $region98: #{cnn_forward.1} parent=11 // pred_check_branch
        %652 = sbr.rel (%p650) target = $region100
      $region99: #{cnn_forward.1} parent=11 // pred_region
        _
      $region100: #{cnn_forward.1} parent=11 // pred_fallthru
        _
    $region12: #{cnn_forward.1} parent=5 // pred_fallthru
      _
    %p653 = scmp.lt.s32.totalorder %s32, 2
    // Predicated region
    $region101: #{cnn_forward.1} parent=5 // pred_check
      %p654 = pneg %p653
    $region102: #{cnn_forward.1} parent=5 // pred_check_branch
      %656 = sbr.rel (%p654) target = $region104
    $region103: #{cnn_forward.1} parent=5 // pred_region
      // Predicated region
      $region105: #{cnn_forward.1} parent=103 // pred_check
        %p657 = pneg %p52
      $region106: #{cnn_forward.1} parent=103 // pred_check_branch
        %659 = sbr.rel (%p657) target = $region108
      $region107: #{cnn_forward.1} parent=103 // pred_region
        %p660 = scmp.lt.s32.totalorder %s32, 1
        %s661 = scalar_select %p660, %s32, 1
        %s662 = smul.addr %s661, 38
        %s663 = smul.addr %s662, 4
        %s664 = scalar_lea.vmem %s0, %s663
      $region108: #{cnn_forward.1} parent=103 // pred_fallthru
        _
      // Predicated region
      $region109: #{cnn_forward.1} parent=103 // pred_check
        %p665 = pneg %p78
      $region110: #{cnn_forward.1} parent=103 // pred_check_branch
        %667 = sbr.rel (%p665) target = $region112
      $region111: #{cnn_forward.1} parent=103 // pred_region
        %p668 = scmp.lt.s32.totalorder %s32, 1
        %s669 = scalar_select %p668, %s32, 1
        %s670 = scalar_lea.vmem %s1, %s669
      $region112: #{cnn_forward.1} parent=103 // pred_fallthru
        _
    $region104: #{cnn_forward.1} parent=5 // pred_fallthru
      _
    %p671 = scmp.le.s32.totalorder 1, %s32
    %p672 = scmp.lt.s32.totalorder %s32, 3
    %p673 = pnand %p671, %p672
    %p674 = pneg %p673
    // Predicated region
    $region113: #{cnn_forward.1} parent=5 // pred_check
      _
    $region114: #{cnn_forward.1} parent=5 // pred_check_branch
      %676 = sbr.rel (%p673) target = $region116
    $region115: #{cnn_forward.1} parent=5 // pred_region
      %s677 = ssub.s32 %s32, 1
      %p678 = scmp.lt.s32.totalorder %s37, 1
      %s679 = scalar_select %p678, %s37, 1
      %s680 = smul.addr %s679, 38
      %s681 = smul.addr %s680, 4
      %s682 = scalar_lea.vmem %s0, %s681
      %p683 = pneg %p58
      %p684 = pneg %p55
      %p685 = scmp.lt.s32.totalorder %s37, 1
      %s686 = scalar_select %p685, %s37, 1
      %s687 = scalar_lea.vmem %s1, %s686
      %p688 = pneg %p84
      %p689 = pneg %p81
      %p690 = pneg %p105
      %p691 = pneg %p102
      %p692 = pneg %p126
      %p693 = pneg %p123
      %p694 = pneg %p147
      %p695 = pneg %p144
      %p696 = pneg %p168
      %p697 = pneg %p165
      %p698 = pneg %p189
      %p699 = pneg %p186
      %p700 = pneg %p210
      %p701 = pneg %p207
      %p702 = pneg %p231
      %p703 = pneg %p228
      %p704 = pneg %p252
      %p705 = pneg %p249
      %p706 = pneg %p273
      %p707 = pneg %p270
      %p708 = pneg %p294
      %p709 = pneg %p291
      %p710 = pneg %p315
      %p711 = pneg %p312
      %p712 = pneg %p336
      %p713 = pneg %p333
      %p714 = pneg %p357
      %p715 = pneg %p354
      %p716 = pneg %p378
      %p717 = pneg %p375
      %p718 = pneg %p399
      %p719 = pneg %p396
      %p720 = pneg %p420
      %p721 = pneg %p417
      %p722 = pneg %p441
      %p723 = pneg %p438
      %p724 = pneg %p462
      %p725 = pneg %p459
      %p726 = pneg %p483
      %p727 = pneg %p480
      %p728 = pneg %p504
      %p729 = pneg %p501
      %p730 = pneg %p525
      %p731 = pneg %p522
      %p732 = pneg %p546
      %p733 = pneg %p543
      %p734 = pneg %p572
      %p735 = pneg %p569
      %p736 = scmp.lt.s32.totalorder %s37, 1
      %s737 = scalar_select %p736, %s37, 1
      %s738 = scalar_lea.vmem %s24, %s737
      %p739 = scmp.lt.s32.totalorder %s37, 1
      %s740 = scalar_select %p739, %s37, 1
      %s741 = smul.addr %s740, 38
      %s742 = smul.addr %s741, 4
      %s743 = scalar_lea.vmem %s0, %s742
      %p744 = scmp.lt.s32.totalorder %s37, 1
      %s745 = scalar_select %p744, %s37, 1
      %s746 = scalar_lea.vmem %s1, %s745
      %p747 = scmp.lt.s32.totalorder %s37, 1
      %s748 = scalar_select %p747, %s37, 1
      %s749 = scalar_lea.vmem %s24, %s748
      %v751 = vld [vmem:[%s743] sm:$0xf]
      %v752 = vld [vmem:[%s743 + $0x4] sm:$0xf]
      %v753 = vld [vmem:[%s743 + $0x8] sm:$0xf]
      %v754 = vld [vmem:[%s743 + $0xc] sm:$0xf]
      %v755 = vld [vmem:[%s743 + $0x10] sm:$0xf]
      %v756 = vld [vmem:[%s743 + $0x14] sm:$0xf]
      %v757 = vld [vmem:[%s743 + $0x18] sm:$0xf]
      %v758 = vld [vmem:[%s743 + $0x1c] sm:$0xf]
      %v759 = vld [vmem:[%s743 + $0x20] sm:$0xf]
      %v760 = vld [vmem:[%s743 + $0x24] sm:$0xf]
      %v761 = vld [vmem:[%s743 + $0x28] sm:$0xf]
      %v762 = vld [vmem:[%s743 + $0x2c] sm:$0xf]
      %v763 = vld [vmem:[%s743 + $0x30] sm:$0xf]
      %v764 = vld [vmem:[%s743 + $0x34] sm:$0xf]
      %v765 = vld [vmem:[%s743 + $0x38] sm:$0xf]
      %v766 = vld [vmem:[%s743 + $0x3c] sm:$0xf]
      %v767 = vld [vmem:[%s743 + $0x40] sm:$0xf]
      %v768 = vld [vmem:[%s743 + $0x44] sm:$0xf]
      %v769 = vld [vmem:[%s743 + $0x48] sm:$0xf]
      %v770 = vld [vmem:[%s743 + $0x4c] sm:$0xf]
      %v771 = vld [vmem:[%s743 + $0x50] sm:$0xf]
      %v772 = vld [vmem:[%s743 + $0x54] sm:$0xf]
      %v773 = vld [vmem:[%s743 + $0x58] sm:$0xf]
      %v774 = vld [vmem:[%s743 + $0x5c] sm:$0xf]
      %v775 = vld [vmem:[%s743 + $0x60] sm:$0xf]
      %v776 = vld [vmem:[%s743 + $0x64] sm:$0xf]
      %v777 = vld [vmem:[%s743 + $0x68] sm:$0xf]
      %v778 = vld [vmem:[%s743 + $0x6c] sm:$0xf]
      %v779 = vld [vmem:[%s743 + $0x70] sm:$0xf]
      %v780 = vld [vmem:[%s743 + $0x74] sm:$0xf]
      %v781 = vld [vmem:[%s743 + $0x78] sm:$0xf]
      %v782 = vld [vmem:[%s743 + $0x7c] sm:$0xf]
      %v783 = vld [vmem:[%s743 + $0x80] sm:$0xf]
      %v784 = vld [vmem:[%s743 + $0x84] sm:$0xf]
      %v785 = vld [vmem:[%s743 + $0x88] sm:$0xf]
      %v786 = vld [vmem:[%s743 + $0x8c] sm:$0xf]
      %v787 = vld [vmem:[%s743 + $0x90] sm:$0xf]
      %v788 = vld [vmem:[%s743 + $0x94] sm:$0x3]
      %v789 = vld [vmem:[%s2] sm:$0xff]
      %v790 = vld [vmem:[%s2 + $0x8] sm:$0xf]
      %v791 = vld [vmem:[%s2 + $0xc] sm:$0xff]
      %v792 = vld [vmem:[%s2 + $0x14] sm:$0xf]
      %v793 = vld [vmem:[%s2 + $0x18] sm:$0xff]
      %v794 = vld [vmem:[%s2 + $0x20] sm:$0xf]
      %v795 = vld [vmem:[%s2 + $0x24] sm:$0xff]
      %v796 = vld [vmem:[%s2 + $0x2c] sm:$0xf]
      %v797 = vld [vmem:[%s2 + $0x30] sm:$0xff]
      %v798 = vld [vmem:[%s2 + $0x38] sm:$0xf]
      %v799 = vld [vmem:[%s2 + $0x3c] sm:$0xff]
      %v800 = vld [vmem:[%s2 + $0x44] sm:$0xf]
      %v801 = vld [vmem:[%s2 + $0x48] sm:$0xff]
      %v802 = vld [vmem:[%s2 + $0x50] sm:$0xf]
      %v803 = vld [vmem:[%s2 + $0x54] sm:$0xff]
      %v804 = vld [vmem:[%s2 + $0x5c] sm:$0xf]
      %v805 = vld [vmem:[%s2 + $0x60] sm:$0xff]
      %v806 = vld [vmem:[%s2 + $0x68] sm:$0xf]
      %v807 = vld [vmem:[%s2 + $0x6c] sm:$0xff]
      %v808 = vld [vmem:[%s2 + $0x74] sm:$0xf]
      %v809 = vld [vmem:[%s2 + $0x78] sm:$0xff]
      %v810 = vld [vmem:[%s2 + $0x80] sm:$0xf]
      %v811 = vld [vmem:[%s2 + $0x84] sm:$0xff]
      %v812 = vld [vmem:[%s2 + $0x8c] sm:$0xf]
      %v813 = vld [vmem:[%s2 + $0x90] sm:$0xff]
      %v814 = vld [vmem:[%s2 + $0x98] sm:$0xf]
      %v815 = vld [vmem:[%s2 + $0x9c] sm:$0xff]
      %v816 = vld [vmem:[%s2 + $0xa4] sm:$0xf]
      %v817 = vld [vmem:[%s2 + $0xa8] sm:$0xff]
      %v818 = vld [vmem:[%s2 + $0xb0] sm:$0xf]
      %v819 = vld [vmem:[%s2 + $0xb4] sm:$0xff]
      %v820 = vld [vmem:[%s2 + $0xbc] sm:$0xf]
      %v821 = vld [vmem:[%s2 + $0xc0] sm:$0xff]
      %v822 = vld [vmem:[%s2 + $0xc8] sm:$0xf]
      %v823 = vld [vmem:[%s2 + $0xcc] sm:$0xff]
      %v824 = vld [vmem:[%s2 + $0xd4] sm:$0xf]
      %v825 = vld [vmem:[%s2 + $0xd8] sm:$0xff]
      %v826 = vld [vmem:[%s2 + $0xe0] sm:$0xf]
      %v827 = vld [vmem:[%s2 + $0xe4] sm:$0xff]
      %v828 = vld [vmem:[%s2 + $0xec] sm:$0xf]
      %v829 = vld [vmem:[%s2 + $0xf0] sm:$0xff]
      %v830 = vld [vmem:[%s2 + $0xf8] sm:$0xf]
      %v831 = vld [vmem:[%s2 + $0xfc] sm:$0xff]
      %v832 = vld [vmem:[%s2 + $0x104] sm:$0xf]
      %v833 = vld [vmem:[%s2 + $0x108] sm:$0xff]
      %v834 = vld [vmem:[%s2 + $0x110] sm:$0xf]
      %v835 = vld [vmem:[%s2 + $0x114] sm:$0xff]
      %v836 = vld [vmem:[%s2 + $0x11c] sm:$0xf]
      %v837 = vld [vmem:[%s2 + $0x120] sm:$0xff]
      %v838 = vld [vmem:[%s2 + $0x128] sm:$0xf]
      %v839 = vld [vmem:[%s2 + $0x12c] sm:$0xff]
      %v840 = vld [vmem:[%s2 + $0x134] sm:$0xf]
      %v841 = vld [vmem:[%s2 + $0x138] sm:$0xff]
      %v842 = vld [vmem:[%s2 + $0x140] sm:$0xf]
      %v843 = vld [vmem:[%s2 + $0x144] sm:$0xff]
      %v844 = vld [vmem:[%s2 + $0x14c] sm:$0xf]
      %v845 = vld [vmem:[%s2 + $0x150] sm:$0xff]
      %v846 = vld [vmem:[%s2 + $0x158] sm:$0xf]
      %v847 = vld [vmem:[%s2 + $0x15c] sm:$0xff]
      %v848 = vld [vmem:[%s2 + $0x164] sm:$0xf]
      %v909 = vunpack.c.l.b16 %v789
      %v910 = vunpack.c.h.b16 %v789
      %v911 = vunpack.c.l.b16 %v790
      %v912 = vunpack.c.l.b16 %v791
      %v913 = vunpack.c.h.b16 %v791
      %v914 = vunpack.c.l.b16 %v792
      %v915 = vunpack.c.l.b16 %v793
      %v916 = vunpack.c.h.b16 %v793
      %v917 = vunpack.c.l.b16 %v794
      %v918 = vunpack.c.l.b16 %v795
      %v919 = vunpack.c.h.b16 %v795
      %v920 = vunpack.c.l.b16 %v796
      %v921 = vunpack.c.l.b16 %v797
      %v922 = vunpack.c.h.b16 %v797
      %v923 = vunpack.c.l.b16 %v798
      %v924 = vunpack.c.l.b16 %v799
      %v925 = vunpack.c.h.b16 %v799
      %v926 = vunpack.c.l.b16 %v800
      %v927 = vunpack.c.l.b16 %v801
      %v928 = vunpack.c.h.b16 %v801
      %v929 = vunpack.c.l.b16 %v802
      %v930 = vunpack.c.l.b16 %v803
      %v931 = vunpack.c.h.b16 %v803
      %v932 = vunpack.c.l.b16 %v804
      %v933 = vunpack.c.l.b16 %v805
      %v934 = vunpack.c.h.b16 %v805
      %v935 = vunpack.c.l.b16 %v806
      %v936 = vunpack.c.l.b16 %v807
      %v937 = vunpack.c.h.b16 %v807
      %v938 = vunpack.c.l.b16 %v808
      %v939 = vunpack.c.l.b16 %v809
      %v940 = vunpack.c.h.b16 %v809
      %v941 = vunpack.c.l.b16 %v810
      %v942 = vunpack.c.l.b16 %v811
      %v943 = vunpack.c.h.b16 %v811
      %v944 = vunpack.c.l.b16 %v812
      %v945 = vunpack.c.l.b16 %v813
      %v946 = vunpack.c.h.b16 %v813
      %v947 = vunpack.c.l.b16 %v814
      %v948 = vunpack.c.l.b16 %v815
      %v949 = vunpack.c.h.b16 %v815
      %v950 = vunpack.c.l.b16 %v816
      %v951 = vunpack.c.l.b16 %v817
      %v952 = vunpack.c.h.b16 %v817
      %v953 = vunpack.c.l.b16 %v818
      %v954 = vunpack.c.l.b16 %v819
      %v955 = vunpack.c.h.b16 %v819
      %v956 = vunpack.c.l.b16 %v820
      %v957 = vunpack.c.l.b16 %v821
      %v958 = vunpack.c.h.b16 %v821
      %v959 = vunpack.c.l.b16 %v822
      %v960 = vunpack.c.l.b16 %v823
      %v961 = vunpack.c.h.b16 %v823
      %v962 = vunpack.c.l.b16 %v824
      %v963 = vunpack.c.l.b16 %v825
      %v964 = vunpack.c.h.b16 %v825
      %v965 = vunpack.c.l.b16 %v826
      %v966 = vunpack.c.l.b16 %v827
      %v967 = vunpack.c.h.b16 %v827
      %v968 = vunpack.c.l.b16 %v828
      %v969 = vunpack.c.l.b16 %v829
      %v970 = vunpack.c.h.b16 %v829
      %v971 = vunpack.c.l.b16 %v830
      %v972 = vunpack.c.l.b16 %v831
      %v973 = vunpack.c.h.b16 %v831
      %v974 = vunpack.c.l.b16 %v832
      %v975 = vunpack.c.l.b16 %v833
      %v976 = vunpack.c.h.b16 %v833
      %v977 = vunpack.c.l.b16 %v834
      %v978 = vunpack.c.l.b16 %v835
      %v979 = vunpack.c.h.b16 %v835
      %v980 = vunpack.c.l.b16 %v836
      %v981 = vunpack.c.l.b16 %v837
      %v982 = vunpack.c.h.b16 %v837
      %v983 = vunpack.c.l.b16 %v838
      %v984 = vunpack.c.l.b16 %v839
      %v985 = vunpack.c.h.b16 %v839
      %v986 = vunpack.c.l.b16 %v840
      %v987 = vunpack.c.l.b16 %v841
      %v988 = vunpack.c.h.b16 %v841
      %v989 = vunpack.c.l.b16 %v842
      %v990 = vunpack.c.l.b16 %v843
      %v991 = vunpack.c.h.b16 %v843
      %v992 = vunpack.c.l.b16 %v844
      %v993 = vunpack.c.l.b16 %v845
      %v994 = vunpack.c.h.b16 %v845
      %v995 = vunpack.c.l.b16 %v846
      %v996 = vunpack.c.l.b16 %v847
      %v997 = vunpack.c.h.b16 %v847
      %v998 = vunpack.c.l.b16 %v848
      %v999 = vpack.c.b16 %v912, %v909
      %v1000 = vpack.c.b16 %v913, %v910
      %v1001 = vpack.c.b16 %v914, %v911
      %v1002 = vpack.c.b16 %v918, %v915
      %v1003 = vpack.c.b16 %v919, %v916
      %v1004 = vpack.c.b16 %v920, %v917
      %v1005 = vpack.c.b16 %v924, %v921
      %v1006 = vpack.c.b16 %v925, %v922
      %v1007 = vpack.c.b16 %v926, %v923
      %v1008 = vpack.c.b16 %v930, %v927
      %v1009 = vpack.c.b16 %v931, %v928
      %v1010 = vpack.c.b16 %v932, %v929
      %v1011 = vpack.c.b16 %v936, %v933
      %v1012 = vpack.c.b16 %v937, %v934
      %v1013 = vpack.c.b16 %v938, %v935
      %v1014 = vpack.c.b16 %v942, %v939
      %v1015 = vpack.c.b16 %v943, %v940
      %v1016 = vpack.c.b16 %v944, %v941
      %v1017 = vpack.c.b16 %v948, %v945
      %v1018 = vpack.c.b16 %v949, %v946
      %v1019 = vpack.c.b16 %v950, %v947
      %v1020 = vpack.c.b16 %v954, %v951
      %v1021 = vpack.c.b16 %v955, %v952
      %v1022 = vpack.c.b16 %v956, %v953
      %v1023 = vpack.c.b16 %v960, %v957
      %v1024 = vpack.c.b16 %v961, %v958
      %v1025 = vpack.c.b16 %v962, %v959
      %v1026 = vpack.c.b16 %v966, %v963
      %v1027 = vpack.c.b16 %v967, %v964
      %v1028 = vpack.c.b16 %v968, %v965
      %v1029 = vpack.c.b16 %v972, %v969
      %v1030 = vpack.c.b16 %v973, %v970
      %v1031 = vpack.c.b16 %v974, %v971
      %v1032 = vpack.c.b16 %v978, %v975
      %v1033 = vpack.c.b16 %v979, %v976
      %v1034 = vpack.c.b16 %v980, %v977
      %v1035 = vpack.c.b16 %v984, %v981
      %v1036 = vpack.c.b16 %v985, %v982
      %v1037 = vpack.c.b16 %v986, %v983
      %v1038 = vpack.c.b16 %v990, %v987
      %v1039 = vpack.c.b16 %v991, %v988
      %v1040 = vpack.c.b16 %v992, %v989
      %v1041 = vpack.c.b16 %v996, %v993
      %v1042 = vpack.c.b16 %v997, %v994
      %v1043 = vpack.c.b16 %v998, %v995
      %v1112 = vunpack.c.l.b16 %v751
      %v1113 = vunpack.c.l.b16 %v752
      %v1114 = vunpack.c.l.b16 %v753
      %v1115 = vunpack.c.l.b16 %v754
      %v1116 = vunpack.c.l.b16 %v755
      %v1117 = vunpack.c.l.b16 %v756
      %v1118 = vunpack.c.l.b16 %v757
      %v1119 = vunpack.c.l.b16 %v758
      %v1120 = vunpack.c.l.b16 %v759
      %v1121 = vunpack.c.l.b16 %v760
      %v1122 = vunpack.c.l.b16 %v761
      %v1123 = vunpack.c.l.b16 %v762
      %v1124 = vunpack.c.l.b16 %v763
      %v1125 = vunpack.c.l.b16 %v764
      %v1126 = vunpack.c.l.b16 %v765
      %v1127 = vunpack.c.l.b16 %v766
      %v1128 = vunpack.c.l.b16 %v767
      %v1129 = vunpack.c.l.b16 %v768
      %v1130 = vunpack.c.l.b16 %v769
      %v1131 = vunpack.c.l.b16 %v770
      %v1132 = vunpack.c.l.b16 %v771
      %v1133 = vunpack.c.l.b16 %v772
      %v1134 = vunpack.c.l.b16 %v773
      %v1135 = vunpack.c.l.b16 %v774
      %v1136 = vunpack.c.l.b16 %v775
      %v1137 = vunpack.c.l.b16 %v776
      %v1138 = vunpack.c.l.b16 %v777
      %v1139 = vunpack.c.l.b16 %v778
      %v1140 = vunpack.c.l.b16 %v779
      %v1141 = vunpack.c.l.b16 %v780
      %v1142 = vunpack.c.l.b16 %v781
      %v1143 = vunpack.c.l.b16 %v782
      %v1144 = vunpack.c.l.b16 %v783
      %v1145 = vunpack.c.l.b16 %v784
      %v1146 = vunpack.c.l.b16 %v785
      %v1147 = vunpack.c.l.b16 %v786
      %v1148 = vunpack.c.l.b16 %v787
      %v1149 = vunpack.c.l.b16 %v788
      %v1150 = vpack.c.b16 %v1113, %v1112
      %v1151 = vpack.c.b16 %v1115, %v1114
      %v1152 = vpack.c.b16 %v1117, %v1116
      %v1153 = vpack.c.b16 %v1119, %v1118
      %v1154 = vpack.c.b16 %v1121, %v1120
      %v1155 = vpack.c.b16 %v1123, %v1122
      %v1156 = vpack.c.b16 %v1125, %v1124
      %v1157 = vpack.c.b16 %v1127, %v1126
      %v1158 = vpack.c.b16 %v1129, %v1128
      %v1159 = vpack.c.b16 %v1131, %v1130
      %v1160 = vpack.c.b16 %v1133, %v1132
      %v1161 = vpack.c.b16 %v1135, %v1134
      %v1162 = vpack.c.b16 %v1137, %v1136
      %v1163 = vpack.c.b16 %v1139, %v1138
      %v1164 = vpack.c.b16 %v1141, %v1140
      %v1165 = vpack.c.b16 %v1143, %v1142
      %v1166 = vpack.c.b16 %v1145, %v1144
      %v1167 = vpack.c.b16 %v1147, %v1146
      %v1168 = vpack.c.b16 %v1149, %v1148
      %vm1187 = vcmask 359424
      %v1189 = vsel %vm1187, %v1001, 0
      %v1192 = vsel %vm1187, %v1004, 0
      %v1195 = vsel %vm1187, %v1007, 0
      %v1198 = vsel %vm1187, %v1010, 0
      %v1201 = vsel %vm1187, %v1013, 0
      %v1204 = vsel %vm1187, %v1016, 0
      %v1207 = vsel %vm1187, %v1019, 0
      %v1210 = vsel %vm1187, %v1022, 0
      %v1213 = vsel %vm1187, %v1025, 0
      %v1216 = vsel %vm1187, %v1028, 0
      %v1219 = vsel %vm1187, %v1031, 0
      %v1222 = vsel %vm1187, %v1034, 0
      %v1225 = vsel %vm1187, %v1037, 0
      %v1228 = vsel %vm1187, %v1040, 0
      %v1231 = vsel %vm1187, %v1043, 0
      %vm1233 = vcmask 1045504
      %v1235 = vsel %vm1233, %v1168, 0
      %1237 = vmatpush.bf16.msra.mxu0 %v1157
      %1238 = vmatpush.bf16.msra.mxu0 %v1156
      %1239 = vmatpush.bf16.msra.mxu0 %v1155
      %1240 = vmatpush.bf16.msra.mxu0 %v1154
      %1241 = vmatpush.bf16.msra.mxu0 %v1153
      %1242 = vmatpush.bf16.msra.mxu0 %v1152
      %1243 = vmatpush.bf16.msra.mxu0 %v1151
      %1244 = vmatpush.bf16.msra.mxu0 %v1150
      %1245 = vmatmul.bf16.gmra.mxu0 %v999
      %v1246 = vpop.f32.mrf.mxu0
      %v1247 = vadd.f32 0.0, %v1246
      %v1248 = vpop.f32.mrf.mxu0
      %v1249 = vadd.f32 0.0, %v1248
      %1250 = vmatmul.bf16.gmra.mxu0 %v1002
      %v1251 = vpop.f32.mrf.mxu0
      %v1252 = vadd.f32 0.0, %v1251
      %v1253 = vpop.f32.mrf.mxu0
      %v1254 = vadd.f32 0.0, %v1253
      %1255 = vmatmul.bf16.gmra.mxu0 %v1005
      %v1256 = vpop.f32.mrf.mxu0
      %v1257 = vadd.f32 0.0, %v1256
      %v1258 = vpop.f32.mrf.mxu0
      %v1259 = vadd.f32 0.0, %v1258
      %1260 = vmatmul.bf16.gmra.mxu0 %v1008
      %v1261 = vpop.f32.mrf.mxu0
      %v1262 = vadd.f32 0.0, %v1261
      %v1263 = vpop.f32.mrf.mxu0
      %v1264 = vadd.f32 0.0, %v1263
      %1265 = vmatmul.bf16.gmra.mxu0 %v1011
      %v1266 = vpop.f32.mrf.mxu0
      %v1267 = vadd.f32 0.0, %v1266
      %v1268 = vpop.f32.mrf.mxu0
      %v1269 = vadd.f32 0.0, %v1268
      %1270 = vmatmul.bf16.gmra.mxu0 %v1014
      %v1271 = vpop.f32.mrf.mxu0
      %v1272 = vadd.f32 0.0, %v1271
      %v1273 = vpop.f32.mrf.mxu0
      %v1274 = vadd.f32 0.0, %v1273
      %1275 = vmatmul.bf16.gmra.mxu0 %v1017
      %v1276 = vpop.f32.mrf.mxu0
      %v1277 = vadd.f32 0.0, %v1276
      %v1278 = vpop.f32.mrf.mxu0
      %v1279 = vadd.f32 0.0, %v1278
      %1280 = vmatmul.bf16.gmra.mxu0 %v1020
      %v1281 = vpop.f32.mrf.mxu0
      %v1282 = vadd.f32 0.0, %v1281
      %v1283 = vpop.f32.mrf.mxu0
      %v1284 = vadd.f32 0.0, %v1283
      %1285 = vmatmul.bf16.gmra.mxu0 %v1023
      %v1286 = vpop.f32.mrf.mxu0
      %v1287 = vadd.f32 0.0, %v1286
      %v1288 = vpop.f32.mrf.mxu0
      %v1289 = vadd.f32 0.0, %v1288
      %1290 = vmatmul.bf16.gmra.mxu0 %v1026
      %v1291 = vpop.f32.mrf.mxu0
      %v1292 = vadd.f32 0.0, %v1291
      %v1293 = vpop.f32.mrf.mxu0
      %v1294 = vadd.f32 0.0, %v1293
      %1295 = vmatmul.bf16.gmra.mxu0 %v1029
      %v1296 = vpop.f32.mrf.mxu0
      %v1297 = vadd.f32 0.0, %v1296
      %v1298 = vpop.f32.mrf.mxu0
      %v1299 = vadd.f32 0.0, %v1298
      %1300 = vmatmul.bf16.gmra.mxu0 %v1032
      %v1301 = vpop.f32.mrf.mxu0
      %v1302 = vadd.f32 0.0, %v1301
      %v1303 = vpop.f32.mrf.mxu0
      %v1304 = vadd.f32 0.0, %v1303
      %1305 = vmatmul.bf16.gmra.mxu0 %v1035
      %v1306 = vpop.f32.mrf.mxu0
      %v1307 = vadd.f32 0.0, %v1306
      %v1308 = vpop.f32.mrf.mxu0
      %v1309 = vadd.f32 0.0, %v1308
      %1310 = vmatmul.bf16.gmra.mxu0 %v1038
      %v1311 = vpop.f32.mrf.mxu0
      %v1312 = vadd.f32 0.0, %v1311
      %v1313 = vpop.f32.mrf.mxu0
      %v1314 = vadd.f32 0.0, %v1313
      %1315 = vmatmul.bf16.gmra.mxu0 %v1041
      %v1316 = vpop.f32.mrf.mxu0
      %v1317 = vadd.f32 0.0, %v1316
      %v1318 = vpop.f32.mrf.mxu0
      %v1319 = vadd.f32 0.0, %v1318
      %1320 = vdwg.mxu0
      %1321 = vmatpush.bf16.msra.mxu0 %v1165
      %1322 = vmatpush.bf16.msra.mxu0 %v1164
      %1323 = vmatpush.bf16.msra.mxu0 %v1163
      %1324 = vmatpush.bf16.msra.mxu0 %v1162
      %1325 = vmatpush.bf16.msra.mxu0 %v1161
      %1326 = vmatpush.bf16.msra.mxu0 %v1160
      %1327 = vmatpush.bf16.msra.mxu0 %v1159
      %1328 = vmatpush.bf16.msra.mxu0 %v1158
      %1329 = vmatmul.bf16.gmra.mxu0 %v1000
      %v1330 = vpop.f32.mrf.mxu0
      %v1331 = vadd.f32 %v1247, %v1330
      %v1332 = vpop.f32.mrf.mxu0
      %v1333 = vadd.f32 %v1249, %v1332
      %1334 = vmatmul.bf16.gmra.mxu0 %v1003
      %v1335 = vpop.f32.mrf.mxu0
      %v1336 = vadd.f32 %v1252, %v1335
      %v1337 = vpop.f32.mrf.mxu0
      %v1338 = vadd.f32 %v1254, %v1337
      %1339 = vmatmul.bf16.gmra.mxu0 %v1006
      %v1340 = vpop.f32.mrf.mxu0
      %v1341 = vadd.f32 %v1257, %v1340
      %v1342 = vpop.f32.mrf.mxu0
      %v1343 = vadd.f32 %v1259, %v1342
      %1344 = vmatmul.bf16.gmra.mxu0 %v1009
      %v1345 = vpop.f32.mrf.mxu0
      %v1346 = vadd.f32 %v1262, %v1345
      %v1347 = vpop.f32.mrf.mxu0
      %v1348 = vadd.f32 %v1264, %v1347
      %1349 = vmatmul.bf16.gmra.mxu0 %v1012
      %v1350 = vpop.f32.mrf.mxu0
      %v1351 = vadd.f32 %v1267, %v1350
      %v1352 = vpop.f32.mrf.mxu0
      %v1353 = vadd.f32 %v1269, %v1352
      %1354 = vmatmul.bf16.gmra.mxu0 %v1015
      %v1355 = vpop.f32.mrf.mxu0
      %v1356 = vadd.f32 %v1272, %v1355
      %v1357 = vpop.f32.mrf.mxu0
      %v1358 = vadd.f32 %v1274, %v1357
      %1359 = vmatmul.bf16.gmra.mxu0 %v1018
      %v1360 = vpop.f32.mrf.mxu0
      %v1361 = vadd.f32 %v1277, %v1360
      %v1362 = vpop.f32.mrf.mxu0
      %v1363 = vadd.f32 %v1279, %v1362
      %1364 = vmatmul.bf16.gmra.mxu0 %v1021
      %v1365 = vpop.f32.mrf.mxu0
      %v1366 = vadd.f32 %v1282, %v1365
      %v1367 = vpop.f32.mrf.mxu0
      %v1368 = vadd.f32 %v1284, %v1367
      %1369 = vmatmul.bf16.gmra.mxu0 %v1024
      %v1370 = vpop.f32.mrf.mxu0
      %v1371 = vadd.f32 %v1287, %v1370
      %v1372 = vpop.f32.mrf.mxu0
      %v1373 = vadd.f32 %v1289, %v1372
      %1374 = vmatmul.bf16.gmra.mxu0 %v1027
      %v1375 = vpop.f32.mrf.mxu0
      %v1376 = vadd.f32 %v1292, %v1375
      %v1377 = vpop.f32.mrf.mxu0
      %v1378 = vadd.f32 %v1294, %v1377
      %1379 = vmatmul.bf16.gmra.mxu0 %v1030
      %v1380 = vpop.f32.mrf.mxu0
      %v1381 = vadd.f32 %v1297, %v1380
      %v1382 = vpop.f32.mrf.mxu0
      %v1383 = vadd.f32 %v1299, %v1382
      %1384 = vmatmul.bf16.gmra.mxu0 %v1033
      %v1385 = vpop.f32.mrf.mxu0
      %v1386 = vadd.f32 %v1302, %v1385
      %v1387 = vpop.f32.mrf.mxu0
      %v1388 = vadd.f32 %v1304, %v1387
      %1389 = vmatmul.bf16.gmra.mxu0 %v1036
      %v1390 = vpop.f32.mrf.mxu0
      %v1391 = vadd.f32 %v1307, %v1390
      %v1392 = vpop.f32.mrf.mxu0
      %v1393 = vadd.f32 %v1309, %v1392
      %1394 = vmatmul.bf16.gmra.mxu0 %v1039
      %v1395 = vpop.f32.mrf.mxu0
      %v1396 = vadd.f32 %v1312, %v1395
      %v1397 = vpop.f32.mrf.mxu0
      %v1398 = vadd.f32 %v1314, %v1397
      %1399 = vmatmul.bf16.gmra.mxu0 %v1042
      %v1400 = vpop.f32.mrf.mxu0
      %v1401 = vadd.f32 %v1317, %v1400
      %v1402 = vpop.f32.mrf.mxu0
      %v1403 = vadd.f32 %v1319, %v1402
      %1404 = vdwg.mxu0
      %1405 = vmatpush.bf16.msra.mxu0 0
      %1406 = vmatpush.bf16.msra.mxu0 0
      %1407 = vmatpush.bf16.msra.mxu0 0
      %1408 = vmatpush.bf16.msra.mxu0 0
      %1409 = vmatpush.bf16.msra.mxu0 0
      %1410 = vmatpush.bf16.msra.mxu0 %v1235
      %1411 = vmatpush.bf16.msra.mxu0 %v1167
      %1412 = vmatpush.bf16.msra.mxu0 %v1166
      %1413 = vmatmul.bf16.gmra.mxu0 %v1189
      %v1414 = vpop.f32.mrf.mxu0
      %v1415 = vadd.f32 %v1331, %v1414
      %v1416 = vpop.f32.mrf.mxu0
      %v1417 = vadd.f32 %v1333, %v1416
      %1418 = vmatmul.bf16.gmra.mxu0 %v1192
      %v1419 = vpop.f32.mrf.mxu0
      %v1420 = vadd.f32 %v1336, %v1419
      %v1421 = vpop.f32.mrf.mxu0
      %v1422 = vadd.f32 %v1338, %v1421
      %1423 = vmatmul.bf16.gmra.mxu0 %v1195
      %v1424 = vpop.f32.mrf.mxu0
      %v1425 = vadd.f32 %v1341, %v1424
      %v1426 = vpop.f32.mrf.mxu0
      %v1427 = vadd.f32 %v1343, %v1426
      %1428 = vmatmul.bf16.gmra.mxu0 %v1198
      %v1429 = vpop.f32.mrf.mxu0
      %v1430 = vadd.f32 %v1346, %v1429
      %v1431 = vpop.f32.mrf.mxu0
      %v1432 = vadd.f32 %v1348, %v1431
      %1433 = vmatmul.bf16.gmra.mxu0 %v1201
      %v1434 = vpop.f32.mrf.mxu0
      %v1435 = vadd.f32 %v1351, %v1434
      %v1436 = vpop.f32.mrf.mxu0
      %v1437 = vadd.f32 %v1353, %v1436
      %1438 = vmatmul.bf16.gmra.mxu0 %v1204
      %v1439 = vpop.f32.mrf.mxu0
      %v1440 = vadd.f32 %v1356, %v1439
      %v1441 = vpop.f32.mrf.mxu0
      %v1442 = vadd.f32 %v1358, %v1441
      %1443 = vmatmul.bf16.gmra.mxu0 %v1207
      %v1444 = vpop.f32.mrf.mxu0
      %v1445 = vadd.f32 %v1361, %v1444
      %v1446 = vpop.f32.mrf.mxu0
      %v1447 = vadd.f32 %v1363, %v1446
      %1448 = vmatmul.bf16.gmra.mxu0 %v1210
      %v1449 = vpop.f32.mrf.mxu0
      %v1450 = vadd.f32 %v1366, %v1449
      %v1451 = vpop.f32.mrf.mxu0
      %v1452 = vadd.f32 %v1368, %v1451
      %1453 = vmatmul.bf16.gmra.mxu0 %v1213
      %v1454 = vpop.f32.mrf.mxu0
      %v1455 = vadd.f32 %v1371, %v1454
      %v1456 = vpop.f32.mrf.mxu0
      %v1457 = vadd.f32 %v1373, %v1456
      %1458 = vmatmul.bf16.gmra.mxu0 %v1216
      %v1459 = vpop.f32.mrf.mxu0
      %v1460 = vadd.f32 %v1376, %v1459
      %v1461 = vpop.f32.mrf.mxu0
      %v1462 = vadd.f32 %v1378, %v1461
      %1463 = vmatmul.bf16.gmra.mxu0 %v1219
      %v1464 = vpop.f32.mrf.mxu0
      %v1465 = vadd.f32 %v1381, %v1464
      %v1466 = vpop.f32.mrf.mxu0
      %v1467 = vadd.f32 %v1383, %v1466
      %1468 = vmatmul.bf16.gmra.mxu0 %v1222
      %v1469 = vpop.f32.mrf.mxu0
      %v1470 = vadd.f32 %v1386, %v1469
      %v1471 = vpop.f32.mrf.mxu0
      %v1472 = vadd.f32 %v1388, %v1471
      %1473 = vmatmul.bf16.gmra.mxu0 %v1225
      %v1474 = vpop.f32.mrf.mxu0
      %v1475 = vadd.f32 %v1391, %v1474
      %v1476 = vpop.f32.mrf.mxu0
      %v1477 = vadd.f32 %v1393, %v1476
      %1478 = vmatmul.bf16.gmra.mxu0 %v1228
      %v1479 = vpop.f32.mrf.mxu0
      %v1480 = vadd.f32 %v1396, %v1479
      %v1481 = vpop.f32.mrf.mxu0
      %v1482 = vadd.f32 %v1398, %v1481
      %1483 = vmatmul.bf16.gmra.mxu0 %v1231
      %v1484 = vpop.f32.mrf.mxu0
      %v1485 = vadd.f32 %v1401, %v1484
      %v1486 = vpop.f32.mrf.mxu0
      %v1487 = vadd.f32 %v1403, %v1486
      %1488 = vdwg.mxu0
      %v1489 = vpack.c.bf16 %v1417, %v1415
      %v1490 = vpack.c.bf16 %v1442, %v1440
      %v1491 = vpack.c.bf16 %v1467, %v1465
      %v1492 = vpack.c.bf16 %v1422, %v1420
      %v1493 = vpack.c.bf16 %v1447, %v1445
      %v1494 = vpack.c.bf16 %v1472, %v1470
      %v1495 = vpack.c.bf16 %v1427, %v1425
      %v1496 = vpack.c.bf16 %v1452, %v1450
      %v1497 = vpack.c.bf16 %v1477, %v1475
      %v1498 = vpack.c.bf16 %v1432, %v1430
      %v1499 = vpack.c.bf16 %v1457, %v1455
      %v1500 = vpack.c.bf16 %v1482, %v1480
      %v1501 = vpack.c.bf16 %v1437, %v1435
      %v1502 = vpack.c.bf16 %v1462, %v1460
      %v1503 = vpack.c.bf16 %v1487, %v1485
      %v1504 = vld [vmem:[%s5] sm:$0xf]
      %v1505 = vld [vmem:[%s5 + $0x4] sm:$0xf]
      %v1506 = vld [vmem:[%s5 + $0x8] sm:$0xf]
      %v1507 = vld [vmem:[%s5 + $0xc] sm:$0xf]
      %v1508 = vld [vmem:[%s5 + $0x10] sm:$0xf]
      %v1509 = vld [vmem:[%s5 + $0x14] sm:$0xf]
      %v1510 = vld [vmem:[%s5 + $0x18] sm:$0xf]
      %v1511 = vld [vmem:[%s5 + $0x1c] sm:$0xf]
      %v1512 = vld [vmem:[%s5 + $0x20] sm:$0xf]
      %v1513 = vld [vmem:[%s5 + $0x24] sm:$0xf]
      %v1514 = vld [vmem:[%s5 + $0x28] sm:$0xf]
      %v1515 = vld [vmem:[%s5 + $0x2c] sm:$0xf]
      %v1516 = vld [vmem:[%s5 + $0x30] sm:$0xf]
      %v1517 = vld [vmem:[%s5 + $0x34] sm:$0xf]
      %v1518 = vld [vmem:[%s5 + $0x38] sm:$0xf]
      %v1519 = vld [vmem:[%s5 + $0x3c] sm:$0xf]
      %v1520 = vld [vmem:[%s5 + $0x40] sm:$0xf]
      %v1521 = vld [vmem:[%s5 + $0x44] sm:$0xf]
      %v1522 = vld [vmem:[%s5 + $0x48] sm:$0xf]
      %v1523 = vld [vmem:[%s5 + $0x4c] sm:$0xf]
      %v1524 = vld [vmem:[%s5 + $0x50] sm:$0xf]
      %v1525 = vld [vmem:[%s5 + $0x54] sm:$0xf]
      %v1526 = vld [vmem:[%s5 + $0x58] sm:$0xf]
      %v1527 = vld [vmem:[%s5 + $0x5c] sm:$0xf]
      %v1528 = vld [vmem:[%s5 + $0x60] sm:$0xf]
      %v1529 = vld [vmem:[%s5 + $0x64] sm:$0xf]
      %v1530 = vld [vmem:[%s5 + $0x68] sm:$0xf]
      %v1531 = vld [vmem:[%s5 + $0x6c] sm:$0xf]
      %v1532 = vld [vmem:[%s5 + $0x70] sm:$0xf]
      %v1533 = vld [vmem:[%s5 + $0x74] sm:$0xf]
      %v1534 = vld [vmem:[%s5 + $0x78] sm:$0xf]
      %v1535 = vld [vmem:[%s5 + $0x7c] sm:$0xf]
      %v1536 = vld [vmem:[%s5 + $0x80] sm:$0xf]
      %v1537 = vld [vmem:[%s5 + $0x84] sm:$0xf]
      %v1538 = vld [vmem:[%s5 + $0x88] sm:$0xf]
      %v1539 = vld [vmem:[%s5 + $0x8c] sm:$0xf]
      %v1540 = vld [vmem:[%s5 + $0x90] sm:$0xf]
      %v1541 = vld [vmem:[%s5 + $0x94] sm:$0xf]
      %v1542 = vld [vmem:[%s5 + $0x98] sm:$0xf]
      %v1543 = vld [vmem:[%s5 + $0x9c] sm:$0xf]
      %v1544 = vld [vmem:[%s5 + $0xa0] sm:$0xf]
      %v1545 = vld [vmem:[%s5 + $0xa4] sm:$0xf]
      %v1546 = vld [vmem:[%s5 + $0xa8] sm:$0xf]
      %v1547 = vld [vmem:[%s5 + $0xac] sm:$0xf]
      %v1548 = vld [vmem:[%s5 + $0xb0] sm:$0xf]
      %v1549 = vld [vmem:[%s5 + $0xb4] sm:$0xf]
      %v1550 = vld [vmem:[%s5 + $0xb8] sm:$0xf]
      %v1551 = vld [vmem:[%s5 + $0xbc] sm:$0xf]
      %v1600 = vunpack.c.l.b16 %v1504
      %v1601 = vunpack.c.l.b16 %v1505
      %v1602 = vunpack.c.l.b16 %v1506
      %v1603 = vunpack.c.l.b16 %v1507
      %v1604 = vunpack.c.l.b16 %v1508
      %v1605 = vunpack.c.l.b16 %v1509
      %v1606 = vunpack.c.l.b16 %v1510
      %v1607 = vunpack.c.l.b16 %v1511
      %v1608 = vunpack.c.l.b16 %v1512
      %v1609 = vunpack.c.l.b16 %v1513
      %v1610 = vunpack.c.l.b16 %v1514
      %v1611 = vunpack.c.l.b16 %v1515
      %v1612 = vunpack.c.l.b16 %v1516
      %v1613 = vunpack.c.l.b16 %v1517
      %v1614 = vunpack.c.l.b16 %v1518
      %v1615 = vunpack.c.l.b16 %v1519
      %v1616 = vunpack.c.l.b16 %v1520
      %v1617 = vunpack.c.l.b16 %v1521
      %v1618 = vunpack.c.l.b16 %v1522
      %v1619 = vunpack.c.l.b16 %v1523
      %v1620 = vunpack.c.l.b16 %v1524
      %v1621 = vunpack.c.l.b16 %v1525
      %v1622 = vunpack.c.l.b16 %v1526
      %v1623 = vunpack.c.l.b16 %v1527
      %v1624 = vunpack.c.l.b16 %v1528
      %v1625 = vunpack.c.l.b16 %v1529
      %v1626 = vunpack.c.l.b16 %v1530
      %v1627 = vunpack.c.l.b16 %v1531
      %v1628 = vunpack.c.l.b16 %v1532
      %v1629 = vunpack.c.l.b16 %v1533
      %v1630 = vunpack.c.l.b16 %v1534
      %v1631 = vunpack.c.l.b16 %v1535
      %v1632 = vunpack.c.l.b16 %v1536
      %v1633 = vunpack.c.l.b16 %v1537
      %v1634 = vunpack.c.l.b16 %v1538
      %v1635 = vunpack.c.l.b16 %v1539
      %v1636 = vunpack.c.l.b16 %v1540
      %v1637 = vunpack.c.l.b16 %v1541
      %v1638 = vunpack.c.l.b16 %v1542
      %v1639 = vunpack.c.l.b16 %v1543
      %v1640 = vunpack.c.l.b16 %v1544
      %v1641 = vunpack.c.l.b16 %v1545
      %v1642 = vunpack.c.l.b16 %v1546
      %v1643 = vunpack.c.l.b16 %v1547
      %v1644 = vunpack.c.l.b16 %v1548
      %v1645 = vunpack.c.l.b16 %v1549
      %v1646 = vunpack.c.l.b16 %v1550
      %v1647 = vunpack.c.l.b16 %v1551
      %v1648 = vpack.c.b16 %v1601, %v1600
      %v1649 = vpack.c.b16 %v1603, %v1602
      %v1650 = vpack.c.b16 %v1605, %v1604
      %v1651 = vpack.c.b16 %v1607, %v1606
      %v1652 = vpack.c.b16 %v1609, %v1608
      %v1653 = vpack.c.b16 %v1611, %v1610
      %v1654 = vpack.c.b16 %v1613, %v1612
      %v1655 = vpack.c.b16 %v1615, %v1614
      %v1656 = vpack.c.b16 %v1617, %v1616
      %v1657 = vpack.c.b16 %v1619, %v1618
      %v1658 = vpack.c.b16 %v1621, %v1620
      %v1659 = vpack.c.b16 %v1623, %v1622
      %v1660 = vpack.c.b16 %v1625, %v1624
      %v1661 = vpack.c.b16 %v1627, %v1626
      %v1662 = vpack.c.b16 %v1629, %v1628
      %v1663 = vpack.c.b16 %v1631, %v1630
      %v1664 = vpack.c.b16 %v1633, %v1632
      %v1665 = vpack.c.b16 %v1635, %v1634
      %v1666 = vpack.c.b16 %v1637, %v1636
      %v1667 = vpack.c.b16 %v1639, %v1638
      %v1668 = vpack.c.b16 %v1641, %v1640
      %v1669 = vpack.c.b16 %v1643, %v1642
      %v1670 = vpack.c.b16 %v1645, %v1644
      %v1671 = vpack.c.b16 %v1647, %v1646
      %1696 = vmatpush.bf16.msra.mxu0 %v1655
      %1697 = vmatpush.bf16.msra.mxu0 %v1654
      %1698 = vmatpush.bf16.msra.mxu0 %v1653
      %1699 = vmatpush.bf16.msra.mxu0 %v1652
      %1700 = vmatpush.bf16.msra.mxu0 %v1651
      %1701 = vmatpush.bf16.msra.mxu0 %v1650
      %1702 = vmatpush.bf16.msra.mxu0 %v1649
      %1703 = vmatpush.bf16.msra.mxu0 %v1648
      %1704 = vmatmul.bf16.gmra.mxu0 %v1489
      %v1705 = vpop.f32.mrf.mxu0
      %v1706 = vadd.f32 0.0, %v1705
      %v1707 = vpop.f32.mrf.mxu0
      %v1708 = vadd.f32 0.0, %v1707
      %1709 = vmatmul.bf16.gmra.mxu0 %v1492
      %v1710 = vpop.f32.mrf.mxu0
      %v1711 = vadd.f32 0.0, %v1710
      %v1712 = vpop.f32.mrf.mxu0
      %v1713 = vadd.f32 0.0, %v1712
      %1714 = vmatmul.bf16.gmra.mxu0 %v1495
      %v1715 = vpop.f32.mrf.mxu0
      %v1716 = vadd.f32 0.0, %v1715
      %v1717 = vpop.f32.mrf.mxu0
      %v1718 = vadd.f32 0.0, %v1717
      %1719 = vmatmul.bf16.gmra.mxu0 %v1498
      %v1720 = vpop.f32.mrf.mxu0
      %v1721 = vadd.f32 0.0, %v1720
      %v1722 = vpop.f32.mrf.mxu0
      %v1723 = vadd.f32 0.0, %v1722
      %1724 = vmatmul.bf16.gmra.mxu0 %v1501
      %v1725 = vpop.f32.mrf.mxu0
      %v1726 = vadd.f32 0.0, %v1725
      %v1727 = vpop.f32.mrf.mxu0
      %v1728 = vadd.f32 0.0, %v1727
      %1729 = vdwg.mxu0
      %1730 = vmatpush.bf16.msra.mxu0 %v1663
      %1731 = vmatpush.bf16.msra.mxu0 %v1662
      %1732 = vmatpush.bf16.msra.mxu0 %v1661
      %1733 = vmatpush.bf16.msra.mxu0 %v1660
      %1734 = vmatpush.bf16.msra.mxu0 %v1659
      %1735 = vmatpush.bf16.msra.mxu0 %v1658
      %1736 = vmatpush.bf16.msra.mxu0 %v1657
      %1737 = vmatpush.bf16.msra.mxu0 %v1656
      %1738 = vmatmul.bf16.gmra.mxu0 %v1490
      %v1739 = vpop.f32.mrf.mxu0
      %v1740 = vadd.f32 %v1706, %v1739
      %v1741 = vpop.f32.mrf.mxu0
      %v1742 = vadd.f32 %v1708, %v1741
      %1743 = vmatmul.bf16.gmra.mxu0 %v1493
      %v1744 = vpop.f32.mrf.mxu0
      %v1745 = vadd.f32 %v1711, %v1744
      %v1746 = vpop.f32.mrf.mxu0
      %v1747 = vadd.f32 %v1713, %v1746
      %1748 = vmatmul.bf16.gmra.mxu0 %v1496
      %v1749 = vpop.f32.mrf.mxu0
      %v1750 = vadd.f32 %v1716, %v1749
      %v1751 = vpop.f32.mrf.mxu0
      %v1752 = vadd.f32 %v1718, %v1751
      %1753 = vmatmul.bf16.gmra.mxu0 %v1499
      %v1754 = vpop.f32.mrf.mxu0
      %v1755 = vadd.f32 %v1721, %v1754
      %v1756 = vpop.f32.mrf.mxu0
      %v1757 = vadd.f32 %v1723, %v1756
      %1758 = vmatmul.bf16.gmra.mxu0 %v1502
      %v1759 = vpop.f32.mrf.mxu0
      %v1760 = vadd.f32 %v1726, %v1759
      %v1761 = vpop.f32.mrf.mxu0
      %v1762 = vadd.f32 %v1728, %v1761
      %1763 = vdwg.mxu0
      %1764 = vmatpush.bf16.msra.mxu0 %v1671
      %1765 = vmatpush.bf16.msra.mxu0 %v1670
      %1766 = vmatpush.bf16.msra.mxu0 %v1669
      %1767 = vmatpush.bf16.msra.mxu0 %v1668
      %1768 = vmatpush.bf16.msra.mxu0 %v1667
      %1769 = vmatpush.bf16.msra.mxu0 %v1666
      %1770 = vmatpush.bf16.msra.mxu0 %v1665
      %1771 = vmatpush.bf16.msra.mxu0 %v1664
      %1772 = vmatmul.bf16.gmra.mxu0 %v1491
      %v1773 = vpop.f32.mrf.mxu0
      %v1774 = vadd.f32 %v1740, %v1773
      %v1775 = vpop.f32.mrf.mxu0
      %v1776 = vadd.f32 %v1742, %v1775
      %1777 = vmatmul.bf16.gmra.mxu0 %v1494
      %v1778 = vpop.f32.mrf.mxu0
      %v1779 = vadd.f32 %v1745, %v1778
      %v1780 = vpop.f32.mrf.mxu0
      %v1781 = vadd.f32 %v1747, %v1780
      %1782 = vmatmul.bf16.gmra.mxu0 %v1497
      %v1783 = vpop.f32.mrf.mxu0
      %v1784 = vadd.f32 %v1750, %v1783
      %v1785 = vpop.f32.mrf.mxu0
      %v1786 = vadd.f32 %v1752, %v1785
      %1787 = vmatmul.bf16.gmra.mxu0 %v1500
      %v1788 = vpop.f32.mrf.mxu0
      %v1789 = vadd.f32 %v1755, %v1788
      %v1790 = vpop.f32.mrf.mxu0
      %v1791 = vadd.f32 %v1757, %v1790
      %1792 = vmatmul.bf16.gmra.mxu0 %v1503
      %v1793 = vpop.f32.mrf.mxu0
      %v1794 = vadd.f32 %v1760, %v1793
      %v1795 = vpop.f32.mrf.mxu0
      %v1796 = vadd.f32 %v1762, %v1795
      %1797 = vdwg.mxu0
      %v1798 = vmul.f32 %v1774, 0.33333334
      %v1799 = vmul.f32 %v1776, 0.33333334
      %v1800 = vmul.f32 %v1779, 0.33333334
      %v1801 = vmul.f32 %v1781, 0.33333334
      %v1802 = vmul.f32 %v1784, 0.33333334
      %v1803 = vmul.f32 %v1786, 0.33333334
      %v1804 = vmul.f32 %v1789, 0.33333334
      %v1805 = vmul.f32 %v1791, 0.33333334
      %v1806 = vmul.f32 %v1794, 0.33333334
      %v1807 = vmul.f32 %v1796, 0.33333334
      %v1808 = vld [vmem:[%s6] sm:$0x1]
      %v1810 = vperm.slane %v1808, 0
      %v1812 = vadd.f32 %v1798, %v1810
      %v1813 = vadd.f32 %v1799, %v1810
      %v1814 = vadd.f32 %v1800, %v1810
      %v1815 = vadd.f32 %v1801, %v1810
      %v1816 = vadd.f32 %v1802, %v1810
      %v1817 = vadd.f32 %v1803, %v1810
      %v1818 = vadd.f32 %v1804, %v1810
      %v1819 = vadd.f32 %v1805, %v1810
      %v1820 = vadd.f32 %v1806, %v1810
      %v1821 = vadd.f32 %v1807, %v1810
      %v1822 = vmax.f32 %v1812, 0.0
      %v1823 = vmax.f32 %v1813, 0.0
      %v1824 = vmax.f32 %v1814, 0.0
      %v1825 = vmax.f32 %v1815, 0.0
      %v1826 = vmax.f32 %v1816, 0.0
      %v1827 = vmax.f32 %v1817, 0.0
      %v1828 = vmax.f32 %v1818, 0.0
      %v1829 = vmax.f32 %v1819, 0.0
      %v1830 = vmax.f32 %v1820, 0.0
      %v1831 = vmax.f32 %v1821, 0.0
      %v1832 = vpack.c.bf16 %v1823, %v1822
      %v1833 = vpack.c.bf16 %v1825, %v1824
      %v1834 = vpack.c.bf16 %v1827, %v1826
      %v1835 = vpack.c.bf16 %v1829, %v1828
      %v1836 = vpack.c.bf16 %v1831, %v1830
      %v1837 = vld [vmem:[%s3] sm:$0xf]
      %v1838 = vld [vmem:[%s3 + $0x4] sm:$0xf]
      %v1839 = vld [vmem:[%s3 + $0x8] sm:$0xf]
      %v1840 = vld [vmem:[%s3 + $0xc] sm:$0xf]
      %v1841 = vld [vmem:[%s3 + $0x10] sm:$0xf]
      %v1842 = vld [vmem:[%s3 + $0x14] sm:$0xf]
      %v1843 = vld [vmem:[%s3 + $0x18] sm:$0xf]
      %v1844 = vld [vmem:[%s3 + $0x1c] sm:$0xf]
      %v1845 = vld [vmem:[%s3 + $0x20] sm:$0xf]
      %v1855 = vunpack.c.l.b16 %v1837
      %v1856 = vunpack.c.l.b16 %v1838
      %v1857 = vunpack.c.l.b16 %v1839
      %v1858 = vunpack.c.l.b16 %v1840
      %v1859 = vunpack.c.l.b16 %v1841
      %v1860 = vunpack.c.l.b16 %v1842
      %v1861 = vunpack.c.l.b16 %v1843
      %v1862 = vunpack.c.l.b16 %v1844
      %v1863 = vunpack.c.l.b16 %v1845
      %v1864 = vpack.c.b16 %v1856, %v1855
      %v1865 = vpack.c.b16 %v1858, %v1857
      %v1866 = vpack.c.b16 %v1860, %v1859
      %v1867 = vpack.c.b16 %v1862, %v1861
      %v1868 = vpack.c.b16 %v1863, %v1863
      %vm1869 = vcmask 654336
      %v1871 = vsel %vm1869, %v1864, 0
      %v1874 = vsel %vm1869, %v1865, 0
      %v1877 = vsel %vm1869, %v1866, 0
      %v1880 = vsel %vm1869, %v1867, 0
      %v1883 = vsel %vm1869, %v1868, 0
      %1885 = vmatpush.bf16.msra.mxu0 0
      %1886 = vmatpush.bf16.msra.mxu0 0
      %1887 = vmatpush.bf16.msra.mxu0 0
      %1888 = vmatpush.bf16.msra.mxu0 %v1836
      %1889 = vmatpush.bf16.msra.mxu0 %v1835
      %1890 = vmatpush.bf16.msra.mxu0 %v1834
      %1891 = vmatpush.bf16.msra.mxu0 %v1833
      %1892 = vmatpush.bf16.msra.mxu0 %v1832
      %1893 = vmatmul.bf16.gmra.mxu0 %v1871
      %v1894 = vpop.f32.mrf.mxu0
      %v1895 = vadd.f32 0.0, %v1894
      %v1896 = vpop.f32.mrf.mxu0
      %v1897 = vadd.f32 0.0, %v1896
      %1898 = vmatmul.bf16.gmra.mxu0 %v1874
      %v1899 = vpop.f32.mrf.mxu0
      %v1900 = vadd.f32 0.0, %v1899
      %v1901 = vpop.f32.mrf.mxu0
      %v1902 = vadd.f32 0.0, %v1901
      %1903 = vmatmul.bf16.gmra.mxu0 %v1877
      %v1904 = vpop.f32.mrf.mxu0
      %v1905 = vadd.f32 0.0, %v1904
      %v1906 = vpop.f32.mrf.mxu0
      %v1907 = vadd.f32 0.0, %v1906
      %1908 = vmatmul.bf16.gmra.mxu0 %v1880
      %v1909 = vpop.f32.mrf.mxu0
      %v1910 = vadd.f32 0.0, %v1909
      %v1911 = vpop.f32.mrf.mxu0
      %v1912 = vadd.f32 0.0, %v1911
      %1913 = vmatmul.bf16.gmra.mxu0 %v1883
      %v1914 = vpop.f32.mrf.mxu0
      %v1915 = vadd.f32 0.0, %v1914
      %v1916 = vpop.f32.mrf.mxu0
      %1917 = vdwg.mxu0
      %v1918 = vpack.c.bf16 %v1897, %v1895
      %v1919 = vpack.c.bf16 %v1905, %v1902
      %v1920 = vpack.c.bf16 %v1912, %v1910
      %v1921 = vpack.c.bf16 %v1900, %v1900
      %v1922 = vpack.c.bf16 %v1907, %v1907
      %v1923 = vpack.c.bf16 %v1915, %v1915
      %v1924 = vld [vmem:[%s7] sm:$0xf]
      %v1925 = vld [vmem:[%s7 + $0x4] sm:$0xf]
      %v1926 = vld [vmem:[%s7 + $0x8] sm:$0xf]
      %v1927 = vld [vmem:[%s7 + $0xc] sm:$0xf]
      %v1928 = vld [vmem:[%s7 + $0x10] sm:$0xf]
      %v1929 = vld [vmem:[%s7 + $0x14] sm:$0xf]
      %v1930 = vld [vmem:[%s7 + $0x18] sm:$0xf]
      %v1931 = vld [vmem:[%s7 + $0x1c] sm:$0xf]
      %v1932 = vld [vmem:[%s7 + $0x20] sm:$0xf]
      %v1933 = vld [vmem:[%s7 + $0x24] sm:$0xf]
      %v1934 = vld [vmem:[%s7 + $0x28] sm:$0xf]
      %v1935 = vld [vmem:[%s7 + $0x2c] sm:$0xf]
      %v1936 = vld [vmem:[%s7 + $0x30] sm:$0xf]
      %v1937 = vld [vmem:[%s7 + $0x34] sm:$0xf]
      %v1938 = vld [vmem:[%s7 + $0x38] sm:$0xf]
      %v1939 = vld [vmem:[%s7 + $0x3c] sm:$0xf]
      %v1940 = vld [vmem:[%s7 + $0x40] sm:$0xf]
      %v1941 = vld [vmem:[%s7 + $0x44] sm:$0xf]
      %v1942 = vld [vmem:[%s7 + $0x48] sm:$0xf]
      %v1943 = vld [vmem:[%s7 + $0x4c] sm:$0xf]
      %v1944 = vld [vmem:[%s7 + $0x50] sm:$0xf]
      %v1945 = vld [vmem:[%s7 + $0x54] sm:$0xf]
      %v1946 = vld [vmem:[%s7 + $0x58] sm:$0xf]
      %v1947 = vld [vmem:[%s7 + $0x5c] sm:$0xf]
      %v1948 = vld [vmem:[%s7 + $0x60] sm:$0xf]
      %v1949 = vld [vmem:[%s7 + $0x64] sm:$0xf]
      %v1950 = vld [vmem:[%s7 + $0x68] sm:$0xf]
      %v1951 = vld [vmem:[%s7 + $0x6c] sm:$0xf]
      %v1952 = vld [vmem:[%s7 + $0x70] sm:$0xf]
      %v1953 = vld [vmem:[%s7 + $0x74] sm:$0xf]
      %v1954 = vld [vmem:[%s7 + $0x78] sm:$0xf]
      %v1955 = vld [vmem:[%s7 + $0x7c] sm:$0xf]
      %v1956 = vld [vmem:[%s7 + $0x80] sm:$0xf]
      %v1957 = vld [vmem:[%s7 + $0x84] sm:$0xf]
      %v1958 = vld [vmem:[%s7 + $0x88] sm:$0xf]
      %v1959 = vld [vmem:[%s7 + $0x8c] sm:$0xf]
      %v1960 = vld [vmem:[%s7 + $0x90] sm:$0xf]
      %v1961 = vld [vmem:[%s7 + $0x94] sm:$0xf]
      %v1962 = vld [vmem:[%s7 + $0x98] sm:$0xf]
      %v1963 = vld [vmem:[%s7 + $0x9c] sm:$0xf]
      %v1964 = vld [vmem:[%s7 + $0xa0] sm:$0xf]
      %v1965 = vld [vmem:[%s7 + $0xa4] sm:$0xf]
      %v1966 = vld [vmem:[%s7 + $0xa8] sm:$0xf]
      %v1967 = vld [vmem:[%s7 + $0xac] sm:$0xf]
      %v1968 = vld [vmem:[%s7 + $0xb0] sm:$0xf]
      %v1969 = vld [vmem:[%s7 + $0xb4] sm:$0xf]
      %v1970 = vld [vmem:[%s7 + $0xb8] sm:$0xf]
      %v1971 = vld [vmem:[%s7 + $0xbc] sm:$0xf]
      %v2020 = vunpack.c.l.b16 %v1924
      %v2021 = vunpack.c.l.b16 %v1925
      %v2022 = vunpack.c.l.b16 %v1926
      %v2023 = vunpack.c.l.b16 %v1927
      %v2024 = vunpack.c.l.b16 %v1928
      %v2025 = vunpack.c.l.b16 %v1929
      %v2026 = vunpack.c.l.b16 %v1930
      %v2027 = vunpack.c.l.b16 %v1931
      %v2028 = vunpack.c.l.b16 %v1932
      %v2029 = vunpack.c.l.b16 %v1933
      %v2030 = vunpack.c.l.b16 %v1934
      %v2031 = vunpack.c.l.b16 %v1935
      %v2032 = vunpack.c.l.b16 %v1936
      %v2033 = vunpack.c.l.b16 %v1937
      %v2034 = vunpack.c.l.b16 %v1938
      %v2035 = vunpack.c.l.b16 %v1939
      %v2036 = vunpack.c.l.b16 %v1940
      %v2037 = vunpack.c.l.b16 %v1941
      %v2038 = vunpack.c.l.b16 %v1942
      %v2039 = vunpack.c.l.b16 %v1943
      %v2040 = vunpack.c.l.b16 %v1944
      %v2041 = vunpack.c.l.b16 %v1945
      %v2042 = vunpack.c.l.b16 %v1946
      %v2043 = vunpack.c.l.b16 %v1947
      %v2044 = vunpack.c.l.b16 %v1948
      %v2045 = vunpack.c.l.b16 %v1949
      %v2046 = vunpack.c.l.b16 %v1950
      %v2047 = vunpack.c.l.b16 %v1951
      %v2048 = vunpack.c.l.b16 %v1952
      %v2049 = vunpack.c.l.b16 %v1953
      %v2050 = vunpack.c.l.b16 %v1954
      %v2051 = vunpack.c.l.b16 %v1955
      %v2052 = vunpack.c.l.b16 %v1956
      %v2053 = vunpack.c.l.b16 %v1957
      %v2054 = vunpack.c.l.b16 %v1958
      %v2055 = vunpack.c.l.b16 %v1959
      %v2056 = vunpack.c.l.b16 %v1960
      %v2057 = vunpack.c.l.b16 %v1961
      %v2058 = vunpack.c.l.b16 %v1962
      %v2059 = vunpack.c.l.b16 %v1963
      %v2060 = vunpack.c.l.b16 %v1964
      %v2061 = vunpack.c.l.b16 %v1965
      %v2062 = vunpack.c.l.b16 %v1966
      %v2063 = vunpack.c.l.b16 %v1967
      %v2064 = vunpack.c.l.b16 %v1968
      %v2065 = vunpack.c.l.b16 %v1969
      %v2066 = vunpack.c.l.b16 %v1970
      %v2067 = vunpack.c.l.b16 %v1971
      %v2068 = vpack.c.b16 %v2021, %v2020
      %v2069 = vpack.c.b16 %v2023, %v2022
      %v2070 = vpack.c.b16 %v2025, %v2024
      %v2071 = vpack.c.b16 %v2027, %v2026
      %v2072 = vpack.c.b16 %v2029, %v2028
      %v2073 = vpack.c.b16 %v2031, %v2030
      %v2074 = vpack.c.b16 %v2033, %v2032
      %v2075 = vpack.c.b16 %v2035, %v2034
      %v2076 = vpack.c.b16 %v2037, %v2036
      %v2077 = vpack.c.b16 %v2039, %v2038
      %v2078 = vpack.c.b16 %v2041, %v2040
      %v2079 = vpack.c.b16 %v2043, %v2042
      %v2080 = vpack.c.b16 %v2045, %v2044
      %v2081 = vpack.c.b16 %v2047, %v2046
      %v2082 = vpack.c.b16 %v2049, %v2048
      %v2083 = vpack.c.b16 %v2051, %v2050
      %v2084 = vpack.c.b16 %v2053, %v2052
      %v2085 = vpack.c.b16 %v2055, %v2054
      %v2086 = vpack.c.b16 %v2057, %v2056
      %v2087 = vpack.c.b16 %v2059, %v2058
      %v2088 = vpack.c.b16 %v2061, %v2060
      %v2089 = vpack.c.b16 %v2063, %v2062
      %v2090 = vpack.c.b16 %v2065, %v2064
      %v2091 = vpack.c.b16 %v2067, %v2066
      %2116 = vmatpush.bf16.msra.mxu0 %v2075
      %2117 = vmatpush.bf16.msra.mxu0 %v2074
      %2118 = vmatpush.bf16.msra.mxu0 %v2073
      %2119 = vmatpush.bf16.msra.mxu0 %v2072
      %2120 = vmatpush.bf16.msra.mxu0 %v2071
      %2121 = vmatpush.bf16.msra.mxu0 %v2070
      %2122 = vmatpush.bf16.msra.mxu0 %v2069
      %2123 = vmatpush.bf16.msra.mxu0 %v2068
      %2124 = vmatmul.bf16.gmra.mxu0 %v1918
      %v2125 = vpop.f32.mrf.mxu0
      %v2126 = vadd.f32 0.0, %v2125
      %v2127 = vpop.f32.mrf.mxu0
      %v2128 = vadd.f32 0.0, %v2127
      %2129 = vmatmul.bf16.gmra.mxu0 %v1921
      %v2130 = vpop.f32.mrf.mxu0
      %v2131 = vadd.f32 0.0, %v2130
      %v2132 = vpop.f32.mrf.mxu0
      %2133 = vdwg.mxu0
      %2134 = vmatpush.bf16.msra.mxu0 %v2083
      %2135 = vmatpush.bf16.msra.mxu0 %v2082
      %2136 = vmatpush.bf16.msra.mxu0 %v2081
      %2137 = vmatpush.bf16.msra.mxu0 %v2080
      %2138 = vmatpush.bf16.msra.mxu0 %v2079
      %2139 = vmatpush.bf16.msra.mxu0 %v2078
      %2140 = vmatpush.bf16.msra.mxu0 %v2077
      %2141 = vmatpush.bf16.msra.mxu0 %v2076
      %2142 = vmatmul.bf16.gmra.mxu0 %v1919
      %v2143 = vpop.f32.mrf.mxu0
      %v2144 = vadd.f32 %v2126, %v2143
      %v2145 = vpop.f32.mrf.mxu0
      %v2146 = vadd.f32 %v2128, %v2145
      %2147 = vmatmul.bf16.gmra.mxu0 %v1922
      %v2148 = vpop.f32.mrf.mxu0
      %v2149 = vadd.f32 %v2131, %v2148
      %v2150 = vpop.f32.mrf.mxu0
      %2151 = vdwg.mxu0
      %2152 = vmatpush.bf16.msra.mxu0 %v2091
      %2153 = vmatpush.bf16.msra.mxu0 %v2090
      %2154 = vmatpush.bf16.msra.mxu0 %v2089
      %2155 = vmatpush.bf16.msra.mxu0 %v2088
      %2156 = vmatpush.bf16.msra.mxu0 %v2087
      %2157 = vmatpush.bf16.msra.mxu0 %v2086
      %2158 = vmatpush.bf16.msra.mxu0 %v2085
      %2159 = vmatpush.bf16.msra.mxu0 %v2084
      %2160 = vmatmul.bf16.gmra.mxu0 %v1920
      %v2161 = vpop.f32.mrf.mxu0
      %v2162 = vadd.f32 %v2144, %v2161
      %v2163 = vpop.f32.mrf.mxu0
      %v2164 = vadd.f32 %v2146, %v2163
      %2165 = vmatmul.bf16.gmra.mxu0 %v1923
      %v2166 = vpop.f32.mrf.mxu0
      %v2167 = vadd.f32 %v2149, %v2166
      %v2168 = vpop.f32.mrf.mxu0
      %2169 = vdwg.mxu0
      %v2170 = vmul.f32 %v2162, 0.33333334
      %v2171 = vmul.f32 %v2164, 0.33333334
      %v2172 = vmul.f32 %v2167, 0.33333334
      %v2173 = vld [vmem:[%s8] sm:$0x1]
      %v2175 = vperm.slane %v2173, 0
      %v2177 = vadd.f32 %v2170, %v2175
      %v2178 = vadd.f32 %v2171, %v2175
      %v2179 = vadd.f32 %v2172, %v2175
      %v2180 = vmax.f32 %v2177, 0.0
      %v2181 = vmax.f32 %v2178, 0.0
      %v2182 = vmax.f32 %v2179, 0.0
      %v2183 = vpack.c.bf16 %v2181, %v2180
      %v2184 = vpack.c.bf16 %v2182, %v2182
      %v2185 = vld [vmem:[%s4] sm:$0xf]
      %v2186 = vld [vmem:[%s4 + $0x4] sm:$0xf]
      %v2187 = vld [vmem:[%s4 + $0x8] sm:$0xf]
      %v2191 = vunpack.c.l.b16 %v2185
      %v2192 = vunpack.c.l.b16 %v2186
      %v2193 = vunpack.c.l.b16 %v2187
      %v2194 = vpack.c.b16 %v2192, %v2191
      %v2195 = vpack.c.b16 %v2193, %v2193
      %vm2196 = vcmask 195584
      %v2198 = vsel %vm2196, %v2194, 0
      %v2201 = vsel %vm2196, %v2195, 0
      %vm2203 = vcmask 1043456
      %v2205 = vsel %vm2203, %v2184, 0
      %2207 = vmatpush.bf16.msra.mxu0 0
      %2208 = vmatpush.bf16.msra.mxu0 0
      %2209 = vmatpush.bf16.msra.mxu0 0
      %2210 = vmatpush.bf16.msra.mxu0 0
      %2211 = vmatpush.bf16.msra.mxu0 0
      %2212 = vmatpush.bf16.msra.mxu0 0
      %2213 = vmatpush.bf16.msra.mxu0 %v2205
      %2214 = vmatpush.bf16.msra.mxu0 %v2183
      %2215 = vmatmul.bf16.gmra.mxu0 %v2198
      %v2216 = vpop.f32.mrf.mxu0
      %v2217 = vadd.f32 0.0, %v2216
      %v2218 = vpop.f32.mrf.mxu0
      %v2219 = vadd.f32 0.0, %v2218
      %2220 = vmatmul.bf16.gmra.mxu0 %v2201
      %v2221 = vpop.f32.mrf.mxu0
      %v2222 = vadd.f32 0.0, %v2221
      %v2223 = vpop.f32.mrf.mxu0
      %2224 = vdwg.mxu0
      %v2225 = vpack.c.bf16 %v2217, %v2217
      %v2226 = vpack.c.bf16 %v2219, %v2219
      %v2227 = vpack.c.bf16 %v2222, %v2222
      %v2228 = vld [vmem:[%s9] sm:$0xf]
      %v2229 = vld [vmem:[%s9 + $0x4] sm:$0xf]
      %v2230 = vld [vmem:[%s9 + $0x8] sm:$0xf]
      %v2231 = vld [vmem:[%s9 + $0xc] sm:$0xf]
      %v2232 = vld [vmem:[%s9 + $0x10] sm:$0xf]
      %v2233 = vld [vmem:[%s9 + $0x14] sm:$0xf]
      %v2234 = vld [vmem:[%s9 + $0x18] sm:$0xf]
      %v2235 = vld [vmem:[%s9 + $0x1c] sm:$0xf]
      %v2236 = vld [vmem:[%s9 + $0x20] sm:$0xf]
      %v2237 = vld [vmem:[%s9 + $0x24] sm:$0xf]
      %v2238 = vld [vmem:[%s9 + $0x28] sm:$0xf]
      %v2239 = vld [vmem:[%s9 + $0x2c] sm:$0xf]
      %v2240 = vld [vmem:[%s9 + $0x30] sm:$0xf]
      %v2241 = vld [vmem:[%s9 + $0x34] sm:$0xf]
      %v2242 = vld [vmem:[%s9 + $0x38] sm:$0xf]
      %v2243 = vld [vmem:[%s9 + $0x3c] sm:$0xf]
      %v2244 = vld [vmem:[%s9 + $0x40] sm:$0xf]
      %v2245 = vld [vmem:[%s9 + $0x44] sm:$0xf]
      %v2246 = vld [vmem:[%s9 + $0x48] sm:$0xf]
      %v2247 = vld [vmem:[%s9 + $0x4c] sm:$0xf]
      %v2248 = vld [vmem:[%s9 + $0x50] sm:$0xf]
      %v2249 = vld [vmem:[%s9 + $0x54] sm:$0xf]
      %v2250 = vld [vmem:[%s9 + $0x58] sm:$0xf]
      %v2251 = vld [vmem:[%s9 + $0x5c] sm:$0xf]
      %v2252 = vld [vmem:[%s9 + $0x60] sm:$0xf]
      %v2253 = vld [vmem:[%s9 + $0x64] sm:$0xf]
      %v2254 = vld [vmem:[%s9 + $0x68] sm:$0xf]
      %v2255 = vld [vmem:[%s9 + $0x6c] sm:$0xf]
      %v2256 = vld [vmem:[%s9 + $0x70] sm:$0xf]
      %v2257 = vld [vmem:[%s9 + $0x74] sm:$0xf]
      %v2258 = vld [vmem:[%s9 + $0x78] sm:$0xf]
      %v2259 = vld [vmem:[%s9 + $0x7c] sm:$0xf]
      %v2260 = vld [vmem:[%s9 + $0x80] sm:$0xf]
      %v2261 = vld [vmem:[%s9 + $0x84] sm:$0xf]
      %v2262 = vld [vmem:[%s9 + $0x88] sm:$0xf]
      %v2263 = vld [vmem:[%s9 + $0x8c] sm:$0xf]
      %v2264 = vld [vmem:[%s9 + $0x90] sm:$0xf]
      %v2265 = vld [vmem:[%s9 + $0x94] sm:$0xf]
      %v2266 = vld [vmem:[%s9 + $0x98] sm:$0xf]
      %v2267 = vld [vmem:[%s9 + $0x9c] sm:$0xf]
      %v2268 = vld [vmem:[%s9 + $0xa0] sm:$0xf]
      %v2269 = vld [vmem:[%s9 + $0xa4] sm:$0xf]
      %v2270 = vld [vmem:[%s9 + $0xa8] sm:$0xf]
      %v2271 = vld [vmem:[%s9 + $0xac] sm:$0xf]
      %v2272 = vld [vmem:[%s9 + $0xb0] sm:$0xf]
      %v2273 = vld [vmem:[%s9 + $0xb4] sm:$0xf]
      %v2274 = vld [vmem:[%s9 + $0xb8] sm:$0xf]
      %v2275 = vld [vmem:[%s9 + $0xbc] sm:$0xf]
      %v2324 = vunpack.c.l.b16 %v2228
      %v2325 = vunpack.c.l.b16 %v2229
      %v2326 = vunpack.c.l.b16 %v2230
      %v2327 = vunpack.c.l.b16 %v2231
      %v2328 = vunpack.c.l.b16 %v2232
      %v2329 = vunpack.c.l.b16 %v2233
      %v2330 = vunpack.c.l.b16 %v2234
      %v2331 = vunpack.c.l.b16 %v2235
      %v2332 = vunpack.c.l.b16 %v2236
      %v2333 = vunpack.c.l.b16 %v2237
      %v2334 = vunpack.c.l.b16 %v2238
      %v2335 = vunpack.c.l.b16 %v2239
      %v2336 = vunpack.c.l.b16 %v2240
      %v2337 = vunpack.c.l.b16 %v2241
      %v2338 = vunpack.c.l.b16 %v2242
      %v2339 = vunpack.c.l.b16 %v2243
      %v2340 = vunpack.c.l.b16 %v2244
      %v2341 = vunpack.c.l.b16 %v2245
      %v2342 = vunpack.c.l.b16 %v2246
      %v2343 = vunpack.c.l.b16 %v2247
      %v2344 = vunpack.c.l.b16 %v2248
      %v2345 = vunpack.c.l.b16 %v2249
      %v2346 = vunpack.c.l.b16 %v2250
      %v2347 = vunpack.c.l.b16 %v2251
      %v2348 = vunpack.c.l.b16 %v2252
      %v2349 = vunpack.c.l.b16 %v2253
      %v2350 = vunpack.c.l.b16 %v2254
      %v2351 = vunpack.c.l.b16 %v2255
      %v2352 = vunpack.c.l.b16 %v2256
      %v2353 = vunpack.c.l.b16 %v2257
      %v2354 = vunpack.c.l.b16 %v2258
      %v2355 = vunpack.c.l.b16 %v2259
      %v2356 = vunpack.c.l.b16 %v2260
      %v2357 = vunpack.c.l.b16 %v2261
      %v2358 = vunpack.c.l.b16 %v2262
      %v2359 = vunpack.c.l.b16 %v2263
      %v2360 = vunpack.c.l.b16 %v2264
      %v2361 = vunpack.c.l.b16 %v2265
      %v2362 = vunpack.c.l.b16 %v2266
      %v2363 = vunpack.c.l.b16 %v2267
      %v2364 = vunpack.c.l.b16 %v2268
      %v2365 = vunpack.c.l.b16 %v2269
      %v2366 = vunpack.c.l.b16 %v2270
      %v2367 = vunpack.c.l.b16 %v2271
      %v2368 = vunpack.c.l.b16 %v2272
      %v2369 = vunpack.c.l.b16 %v2273
      %v2370 = vunpack.c.l.b16 %v2274
      %v2371 = vunpack.c.l.b16 %v2275
      %v2372 = vpack.c.b16 %v2325, %v2324
      %v2373 = vpack.c.b16 %v2327, %v2326
      %v2374 = vpack.c.b16 %v2329, %v2328
      %v2375 = vpack.c.b16 %v2331, %v2330
      %v2376 = vpack.c.b16 %v2333, %v2332
      %v2377 = vpack.c.b16 %v2335, %v2334
      %v2378 = vpack.c.b16 %v2337, %v2336
      %v2379 = vpack.c.b16 %v2339, %v2338
      %v2380 = vpack.c.b16 %v2341, %v2340
      %v2381 = vpack.c.b16 %v2343, %v2342
      %v2382 = vpack.c.b16 %v2345, %v2344
      %v2383 = vpack.c.b16 %v2347, %v2346
      %v2384 = vpack.c.b16 %v2349, %v2348
      %v2385 = vpack.c.b16 %v2351, %v2350
      %v2386 = vpack.c.b16 %v2353, %v2352
      %v2387 = vpack.c.b16 %v2355, %v2354
      %v2388 = vpack.c.b16 %v2357, %v2356
      %v2389 = vpack.c.b16 %v2359, %v2358
      %v2390 = vpack.c.b16 %v2361, %v2360
      %v2391 = vpack.c.b16 %v2363, %v2362
      %v2392 = vpack.c.b16 %v2365, %v2364
      %v2393 = vpack.c.b16 %v2367, %v2366
      %v2394 = vpack.c.b16 %v2369, %v2368
      %v2395 = vpack.c.b16 %v2371, %v2370
      %2420 = vmatpush.bf16.msra.mxu0 %v2379
      %2421 = vmatpush.bf16.msra.mxu0 %v2378
      %2422 = vmatpush.bf16.msra.mxu0 %v2377
      %2423 = vmatpush.bf16.msra.mxu0 %v2376
      %2424 = vmatpush.bf16.msra.mxu0 %v2375
      %2425 = vmatpush.bf16.msra.mxu0 %v2374
      %2426 = vmatpush.bf16.msra.mxu0 %v2373
      %2427 = vmatpush.bf16.msra.mxu0 %v2372
      %2428 = vmatmul.bf16.gmra.mxu0 %v2225
      %v2429 = vpop.f32.mrf.mxu0
      %v2430 = vadd.f32 0.0, %v2429
      %v2431 = vpop.f32.mrf.mxu0
      %2432 = vdwg.mxu0
      %2433 = vmatpush.bf16.msra.mxu0 %v2387
      %2434 = vmatpush.bf16.msra.mxu0 %v2386
      %2435 = vmatpush.bf16.msra.mxu0 %v2385
      %2436 = vmatpush.bf16.msra.mxu0 %v2384
      %2437 = vmatpush.bf16.msra.mxu0 %v2383
      %2438 = vmatpush.bf16.msra.mxu0 %v2382
      %2439 = vmatpush.bf16.msra.mxu0 %v2381
      %2440 = vmatpush.bf16.msra.mxu0 %v2380
      %2441 = vmatmul.bf16.gmra.mxu0 %v2226
      %v2442 = vpop.f32.mrf.mxu0
      %v2443 = vadd.f32 %v2430, %v2442
      %v2444 = vpop.f32.mrf.mxu0
      %2445 = vdwg.mxu0
      %2446 = vmatpush.bf16.msra.mxu0 %v2395
      %2447 = vmatpush.bf16.msra.mxu0 %v2394
      %2448 = vmatpush.bf16.msra.mxu0 %v2393
      %2449 = vmatpush.bf16.msra.mxu0 %v2392
      %2450 = vmatpush.bf16.msra.mxu0 %v2391
      %2451 = vmatpush.bf16.msra.mxu0 %v2390
      %2452 = vmatpush.bf16.msra.mxu0 %v2389
      %2453 = vmatpush.bf16.msra.mxu0 %v2388
      %2454 = vmatmul.bf16.gmra.mxu0 %v2227
      %v2455 = vpop.f32.mrf.mxu0
      %v2456 = vadd.f32 %v2443, %v2455
      %v2457 = vpop.f32.mrf.mxu0
      %2458 = vdwg.mxu0
      %v2459 = vmul.f32 %v2456, 0.33333334
      %v2460 = vld [vmem:[%s10] sm:$0x1]
      %v2462 = vperm.slane %v2460, 0
      %v2464 = vadd.f32 %v2459, %v2462
      %v2465 = vmax.f32 %v2464, 0.0
      %v2467 = vrot.slane %v2465, 1
      %v2469 = vrot.slane %v2465, 2
      %v2471 = vpack.c.bf16 %v2465, %v2465
      %v2472 = vpack.c.bf16 %v2467, %v2467
      %v2473 = vpack.c.bf16 %v2469, %v2469
      %v2474 = vld [vmem:[%s11] sm:$0xf]
      %v2475 = vld [vmem:[%s11 + $0x4] sm:$0xf]
      %v2476 = vld [vmem:[%s11 + $0x8] sm:$0xf]
      %v2477 = vld [vmem:[%s11 + $0xc] sm:$0xf]
      %v2478 = vld [vmem:[%s11 + $0x10] sm:$0xf]
      %v2479 = vld [vmem:[%s11 + $0x14] sm:$0xf]
      %v2480 = vld [vmem:[%s11 + $0x18] sm:$0xf]
      %v2481 = vld [vmem:[%s11 + $0x1c] sm:$0xf]
      %v2482 = vld [vmem:[%s11 + $0x20] sm:$0xf]
      %v2483 = vld [vmem:[%s11 + $0x24] sm:$0xf]
      %v2484 = vld [vmem:[%s11 + $0x28] sm:$0xf]
      %v2485 = vld [vmem:[%s11 + $0x2c] sm:$0xf]
      %v2486 = vld [vmem:[%s11 + $0x30] sm:$0xf]
      %v2487 = vld [vmem:[%s11 + $0x34] sm:$0xf]
      %v2488 = vld [vmem:[%s11 + $0x38] sm:$0xf]
      %v2489 = vld [vmem:[%s11 + $0x3c] sm:$0xf]
      %v2490 = vld [vmem:[%s11 + $0x40] sm:$0xf]
      %v2491 = vld [vmem:[%s11 + $0x44] sm:$0xf]
      %v2492 = vld [vmem:[%s11 + $0x48] sm:$0xf]
      %v2493 = vld [vmem:[%s11 + $0x4c] sm:$0xf]
      %v2494 = vld [vmem:[%s11 + $0x50] sm:$0xf]
      %v2495 = vld [vmem:[%s11 + $0x54] sm:$0xf]
      %v2496 = vld [vmem:[%s11 + $0x58] sm:$0xf]
      %v2497 = vld [vmem:[%s11 + $0x5c] sm:$0xf]
      %v2498 = vld [vmem:[%s11 + $0x60] sm:$0xf]
      %v2499 = vld [vmem:[%s11 + $0x64] sm:$0xf]
      %v2500 = vld [vmem:[%s11 + $0x68] sm:$0xf]
      %v2501 = vld [vmem:[%s11 + $0x6c] sm:$0xf]
      %v2502 = vld [vmem:[%s11 + $0x70] sm:$0xf]
      %v2503 = vld [vmem:[%s11 + $0x74] sm:$0xf]
      %v2504 = vld [vmem:[%s11 + $0x78] sm:$0xf]
      %v2505 = vld [vmem:[%s11 + $0x7c] sm:$0xf]
      %v2506 = vld [vmem:[%s11 + $0x80] sm:$0xf]
      %v2507 = vld [vmem:[%s11 + $0x84] sm:$0xf]
      %v2508 = vld [vmem:[%s11 + $0x88] sm:$0xf]
      %v2509 = vld [vmem:[%s11 + $0x8c] sm:$0xf]
      %v2510 = vld [vmem:[%s11 + $0x90] sm:$0xf]
      %v2511 = vld [vmem:[%s11 + $0x94] sm:$0xf]
      %v2512 = vld [vmem:[%s11 + $0x98] sm:$0xf]
      %v2513 = vld [vmem:[%s11 + $0x9c] sm:$0xf]
      %v2514 = vld [vmem:[%s11 + $0xa0] sm:$0xf]
      %v2515 = vld [vmem:[%s11 + $0xa4] sm:$0xf]
      %v2516 = vld [vmem:[%s11 + $0xa8] sm:$0xf]
      %v2517 = vld [vmem:[%s11 + $0xac] sm:$0xf]
      %v2518 = vld [vmem:[%s11 + $0xb0] sm:$0xf]
      %v2519 = vld [vmem:[%s11 + $0xb4] sm:$0xf]
      %v2520 = vld [vmem:[%s11 + $0xb8] sm:$0xf]
      %v2521 = vld [vmem:[%s11 + $0xbc] sm:$0xf]
      %v2522 = vld [vmem:[%s12] sm:$0x1]
      %v2571 = vunpack.c.l.b16 %v2474
      %v2572 = vunpack.c.l.b16 %v2475
      %v2573 = vunpack.c.l.b16 %v2476
      %v2574 = vunpack.c.l.b16 %v2477
      %v2575 = vunpack.c.l.b16 %v2478
      %v2576 = vunpack.c.l.b16 %v2479
      %v2577 = vunpack.c.l.b16 %v2480
      %v2578 = vunpack.c.l.b16 %v2481
      %v2579 = vunpack.c.l.b16 %v2482
      %v2580 = vunpack.c.l.b16 %v2483
      %v2581 = vunpack.c.l.b16 %v2484
      %v2582 = vunpack.c.l.b16 %v2485
      %v2583 = vunpack.c.l.b16 %v2486
      %v2584 = vunpack.c.l.b16 %v2487
      %v2585 = vunpack.c.l.b16 %v2488
      %v2586 = vunpack.c.l.b16 %v2489
      %v2587 = vunpack.c.l.b16 %v2490
      %v2588 = vunpack.c.l.b16 %v2491
      %v2589 = vunpack.c.l.b16 %v2492
      %v2590 = vunpack.c.l.b16 %v2493
      %v2591 = vunpack.c.l.b16 %v2494
      %v2592 = vunpack.c.l.b16 %v2495
      %v2593 = vunpack.c.l.b16 %v2496
      %v2594 = vunpack.c.l.b16 %v2497
      %v2595 = vunpack.c.l.b16 %v2498
      %v2596 = vunpack.c.l.b16 %v2499
      %v2597 = vunpack.c.l.b16 %v2500
      %v2598 = vunpack.c.l.b16 %v2501
      %v2599 = vunpack.c.l.b16 %v2502
      %v2600 = vunpack.c.l.b16 %v2503
      %v2601 = vunpack.c.l.b16 %v2504
      %v2602 = vunpack.c.l.b16 %v2505
      %v2603 = vunpack.c.l.b16 %v2506
      %v2604 = vunpack.c.l.b16 %v2507
      %v2605 = vunpack.c.l.b16 %v2508
      %v2606 = vunpack.c.l.b16 %v2509
      %v2607 = vunpack.c.l.b16 %v2510
      %v2608 = vunpack.c.l.b16 %v2511
      %v2609 = vunpack.c.l.b16 %v2512
      %v2610 = vunpack.c.l.b16 %v2513
      %v2611 = vunpack.c.l.b16 %v2514
      %v2612 = vunpack.c.l.b16 %v2515
      %v2613 = vunpack.c.l.b16 %v2516
      %v2614 = vunpack.c.l.b16 %v2517
      %v2615 = vunpack.c.l.b16 %v2518
      %v2616 = vunpack.c.l.b16 %v2519
      %v2617 = vunpack.c.l.b16 %v2520
      %v2618 = vunpack.c.l.b16 %v2521
      %v2619 = vpack.c.b16 %v2572, %v2571
      %v2620 = vpack.c.b16 %v2574, %v2573
      %v2621 = vpack.c.b16 %v2576, %v2575
      %v2622 = vpack.c.b16 %v2578, %v2577
      %v2623 = vpack.c.b16 %v2580, %v2579
      %v2624 = vpack.c.b16 %v2582, %v2581
      %v2625 = vpack.c.b16 %v2584, %v2583
      %v2626 = vpack.c.b16 %v2586, %v2585
      %v2627 = vpack.c.b16 %v2588, %v2587
      %v2628 = vpack.c.b16 %v2590, %v2589
      %v2629 = vpack.c.b16 %v2592, %v2591
      %v2630 = vpack.c.b16 %v2594, %v2593
      %v2631 = vpack.c.b16 %v2596, %v2595
      %v2632 = vpack.c.b16 %v2598, %v2597
      %v2633 = vpack.c.b16 %v2600, %v2599
      %v2634 = vpack.c.b16 %v2602, %v2601
      %v2635 = vpack.c.b16 %v2604, %v2603
      %v2636 = vpack.c.b16 %v2606, %v2605
      %v2637 = vpack.c.b16 %v2608, %v2607
      %v2638 = vpack.c.b16 %v2610, %v2609
      %v2639 = vpack.c.b16 %v2612, %v2611
      %v2640 = vpack.c.b16 %v2614, %v2613
      %v2641 = vpack.c.b16 %v2616, %v2615
      %v2642 = vpack.c.b16 %v2618, %v2617
      %2667 = vmatpush.bf16.msra.mxu0 %v2626
      %2668 = vmatpush.bf16.msra.mxu0 %v2625
      %2669 = vmatpush.bf16.msra.mxu0 %v2624
      %2670 = vmatpush.bf16.msra.mxu0 %v2623
      %2671 = vmatpush.bf16.msra.mxu0 %v2622
      %2672 = vmatpush.bf16.msra.mxu0 %v2621
      %2673 = vmatpush.bf16.msra.mxu0 %v2620
      %2674 = vmatpush.bf16.msra.mxu0 %v2619
      %2675 = vmatmul.bf16.gmra.mxu0 %v2471
      %v2676 = vpop.f32.mrf.mxu0
      %v2677 = vadd.f32 %v2522, %v2676
      %v2678 = vpop.f32.mrf.mxu0
      %2679 = vdwg.mxu0
      %2680 = vmatpush.bf16.msra.mxu0 %v2634
      %2681 = vmatpush.bf16.msra.mxu0 %v2633
      %2682 = vmatpush.bf16.msra.mxu0 %v2632
      %2683 = vmatpush.bf16.msra.mxu0 %v2631
      %2684 = vmatpush.bf16.msra.mxu0 %v2630
      %2685 = vmatpush.bf16.msra.mxu0 %v2629
      %2686 = vmatpush.bf16.msra.mxu0 %v2628
      %2687 = vmatpush.bf16.msra.mxu0 %v2627
      %2688 = vmatmul.bf16.gmra.mxu0 %v2472
      %v2689 = vpop.f32.mrf.mxu0
      %v2690 = vadd.f32 %v2677, %v2689
      %v2691 = vpop.f32.mrf.mxu0
      %2692 = vdwg.mxu0
      %2693 = vmatpush.bf16.msra.mxu0 %v2642
      %2694 = vmatpush.bf16.msra.mxu0 %v2641
      %2695 = vmatpush.bf16.msra.mxu0 %v2640
      %2696 = vmatpush.bf16.msra.mxu0 %v2639
      %2697 = vmatpush.bf16.msra.mxu0 %v2638
      %2698 = vmatpush.bf16.msra.mxu0 %v2637
      %2699 = vmatpush.bf16.msra.mxu0 %v2636
      %2700 = vmatpush.bf16.msra.mxu0 %v2635
      %2701 = vmatmul.bf16.gmra.mxu0 %v2473
      %v2702 = vpop.f32.mrf.mxu0
      %v2703 = vadd.f32 %v2690, %v2702
      %v2704 = vpop.f32.mrf.mxu0
      %2705 = vdwg.mxu0
      %v2706 = vmax.f32 %v2703, 0.0
      %v2707 = vpack.c.bf16 %v2706, %v2706
      %v2708 = vld [vmem:[%s13] sm:$0xf]
      %v2709 = vld [vmem:[%s13 + $0x4] sm:$0xf]
      %v2710 = vld [vmem:[%s13 + $0x8] sm:$0xf]
      %v2711 = vld [vmem:[%s13 + $0xc] sm:$0xf]
      %v2712 = vld [vmem:[%s13 + $0x10] sm:$0xf]
      %v2713 = vld [vmem:[%s13 + $0x14] sm:$0xf]
      %v2714 = vld [vmem:[%s13 + $0x18] sm:$0xf]
      %v2715 = vld [vmem:[%s13 + $0x1c] sm:$0xf]
      %v2716 = vld [vmem:[%s13 + $0x20] sm:$0xf]
      %v2717 = vld [vmem:[%s13 + $0x24] sm:$0xf]
      %v2718 = vld [vmem:[%s13 + $0x28] sm:$0xf]
      %v2719 = vld [vmem:[%s13 + $0x2c] sm:$0xf]
      %v2720 = vld [vmem:[%s13 + $0x30] sm:$0xf]
      %v2721 = vld [vmem:[%s13 + $0x34] sm:$0xf]
      %v2722 = vld [vmem:[%s13 + $0x38] sm:$0xf]
      %v2723 = vld [vmem:[%s13 + $0x3c] sm:$0xf]
      %v2724 = vld [vmem:[%s14] sm:$0x1]
      %v2741 = vunpack.c.l.b16 %v2708
      %v2742 = vunpack.c.l.b16 %v2709
      %v2743 = vunpack.c.l.b16 %v2710
      %v2744 = vunpack.c.l.b16 %v2711
      %v2745 = vunpack.c.l.b16 %v2712
      %v2746 = vunpack.c.l.b16 %v2713
      %v2747 = vunpack.c.l.b16 %v2714
      %v2748 = vunpack.c.l.b16 %v2715
      %v2749 = vunpack.c.l.b16 %v2716
      %v2750 = vunpack.c.l.b16 %v2717
      %v2751 = vunpack.c.l.b16 %v2718
      %v2752 = vunpack.c.l.b16 %v2719
      %v2753 = vunpack.c.l.b16 %v2720
      %v2754 = vunpack.c.l.b16 %v2721
      %v2755 = vunpack.c.l.b16 %v2722
      %v2756 = vunpack.c.l.b16 %v2723
      %v2757 = vpack.c.b16 %v2742, %v2741
      %v2758 = vpack.c.b16 %v2744, %v2743
      %v2759 = vpack.c.b16 %v2746, %v2745
      %v2760 = vpack.c.b16 %v2748, %v2747
      %v2761 = vpack.c.b16 %v2750, %v2749
      %v2762 = vpack.c.b16 %v2752, %v2751
      %v2763 = vpack.c.b16 %v2754, %v2753
      %v2764 = vpack.c.b16 %v2756, %v2755
      %2773 = vmatpush.bf16.msra.mxu0 %v2764
      %2774 = vmatpush.bf16.msra.mxu0 %v2763
      %2775 = vmatpush.bf16.msra.mxu0 %v2762
      %2776 = vmatpush.bf16.msra.mxu0 %v2761
      %2777 = vmatpush.bf16.msra.mxu0 %v2760
      %2778 = vmatpush.bf16.msra.mxu0 %v2759
      %2779 = vmatpush.bf16.msra.mxu0 %v2758
      %2780 = vmatpush.bf16.msra.mxu0 %v2757
      %2781 = vmatmul.bf16.gmra.mxu0 %v2707
      %v2782 = vpop.f32.mrf.mxu0
      %v2783 = vadd.f32 %v2724, %v2782
      %v2784 = vpop.f32.mrf.mxu0
      %2785 = vdwg.mxu0
      %v2786 = vmax.f32 %v2783, 0.0
      %v2787 = vpack.c.bf16 %v2786, %v2786
      %v2788 = vld [vmem:[%s746] sm:$0x1]
      %v2789 = vld [vmem:[%s15] sm:$0xf]
      %v2790 = vld [vmem:[%s15 + $0x4] sm:$0xf]
      %v2791 = vld [vmem:[%s15 + $0x8] sm:$0xf]
      %v2792 = vld [vmem:[%s15 + $0xc] sm:$0xf]
      %v2793 = vld [vmem:[%s16] sm:$0xf]
      %vm2794 = vcmask 64512
      %v2796 = vsel %vm2794, %v2788, 0
      %v2799 = vsel %vm2203, %v2793, 0
      %2801 = vmatpush.bf16.msra.mxu0 0
      %2802 = vmatpush.bf16.msra.mxu0 0
      %2803 = vmatpush.bf16.msra.mxu0 0
      %2804 = vmatpush.bf16.msra.mxu0 0
      %2805 = vmatpush.bf16.msra.mxu0 0
      %2806 = vmatpush.bf16.msra.mxu0 0
      %2807 = vmatpush.bf16.msra.mxu0 0
      %2808 = vmatpush.bf16.msra.mxu0 %v2799
      %2809 = vmatmul.bf16.gmra.mxu0 %v2796
      %v2810 = vpop.f32.mrf.mxu0
      %v2811 = vadd.f32 0.0, %v2810
      %v2812 = vpop.f32.mrf.mxu0
      %2813 = vdwg.mxu0
      %v2818 = vunpack.c.l.b16 %v2789
      %v2819 = vunpack.c.l.b16 %v2790
      %v2820 = vunpack.c.l.b16 %v2791
      %v2821 = vunpack.c.l.b16 %v2792
      %v2822 = vpack.c.b16 %v2819, %v2818
      %v2823 = vpack.c.b16 %v2821, %v2820
      %vm2826 = vcmask 261120
      %v2828 = vsel %vm2826, %v2787, 0
      %2830 = vmatpush.bf16.msra.mxu0 0
      %2831 = vmatpush.bf16.msra.mxu0 0
      %2832 = vmatpush.bf16.msra.mxu0 0
      %2833 = vmatpush.bf16.msra.mxu0 0
      %2834 = vmatpush.bf16.msra.mxu0 0
      %2835 = vmatpush.bf16.msra.mxu0 0
      %2836 = vmatpush.bf16.msra.mxu0 %v2823
      %2837 = vmatpush.bf16.msra.mxu0 %v2822
      %2838 = vmatmul.bf16.gmra.mxu0 %v2828
      %v2839 = vpop.f32.mrf.mxu0
      %v2840 = vadd.f32 %v2811, %v2839
      %v2841 = vpop.f32.mrf.mxu0
      %2842 = vdwg.mxu0
      %v2843 = vld [vmem:[%s17] sm:$0x1]
      %v2844 = vadd.f32 %v2840, %v2843
      %v2845 = vmax.f32 %v2844, 0.0
      %v2846 = vpack.c.bf16 %v2845, %v2845
      %v2847 = vld [vmem:[%s18] sm:$0xf]
      %v2848 = vld [vmem:[%s18 + $0x4] sm:$0xf]
      %v2849 = vld [vmem:[%s18 + $0x8] sm:$0xf]
      %v2850 = vld [vmem:[%s18 + $0xc] sm:$0xf]
      %v2851 = vld [vmem:[%s19] sm:$0x1]
      %v2856 = vunpack.c.l.b16 %v2847
      %v2857 = vunpack.c.l.b16 %v2848
      %v2858 = vunpack.c.l.b16 %v2849
      %v2859 = vunpack.c.l.b16 %v2850
      %v2860 = vpack.c.b16 %v2857, %v2856
      %v2861 = vpack.c.b16 %v2859, %v2858
      %v2865 = vsel %vm2826, %v2846, 0
      %2867 = vmatpush.bf16.msra.mxu0 0
      %2868 = vmatpush.bf16.msra.mxu0 0
      %2869 = vmatpush.bf16.msra.mxu0 0
      %2870 = vmatpush.bf16.msra.mxu0 0
      %2871 = vmatpush.bf16.msra.mxu0 0
      %2872 = vmatpush.bf16.msra.mxu0 0
      %2873 = vmatpush.bf16.msra.mxu0 %v2861
      %2874 = vmatpush.bf16.msra.mxu0 %v2860
      %2875 = vmatmul.bf16.gmra.mxu0 %v2865
      %v2876 = vpop.f32.mrf.mxu0
      %v2877 = vadd.f32 %v2851, %v2876
      %v2878 = vpop.f32.mrf.mxu0
      %2879 = vdwg.mxu0
      %v2880 = vmax.f32 %v2877, 0.0
      %v2881 = vpack.c.bf16 %v2880, %v2880
      %v2882 = vld [vmem:[%s20] sm:$0xf]
      %v2883 = vld [vmem:[%s20 + $0x4] sm:$0xf]
      %v2884 = vld [vmem:[%s20 + $0x8] sm:$0xf]
      %v2885 = vld [vmem:[%s20 + $0xc] sm:$0xf]
      %v2886 = vld [vmem:[%s21] sm:$0x1]
      %v2891 = vunpack.c.l.b16 %v2882
      %v2892 = vunpack.c.l.b16 %v2883
      %v2893 = vunpack.c.l.b16 %v2884
      %v2894 = vunpack.c.l.b16 %v2885
      %v2895 = vpack.c.b16 %v2892, %v2891
      %v2896 = vpack.c.b16 %v2894, %v2893
      %v2900 = vsel %vm2826, %v2881, 0
      %2902 = vmatpush.bf16.msra.mxu0 0
      %2903 = vmatpush.bf16.msra.mxu0 0
      %2904 = vmatpush.bf16.msra.mxu0 0
      %2905 = vmatpush.bf16.msra.mxu0 0
      %2906 = vmatpush.bf16.msra.mxu0 0
      %2907 = vmatpush.bf16.msra.mxu0 0
      %2908 = vmatpush.bf16.msra.mxu0 %v2896
      %2909 = vmatpush.bf16.msra.mxu0 %v2895
      %2910 = vmatmul.bf16.gmra.mxu0 %v2900
      %v2911 = vpop.f32.mrf.mxu0
      %v2912 = vadd.f32 %v2886, %v2911
      %v2913 = vpop.f32.mrf.mxu0
      %2914 = vdwg.mxu0
      %v2915 = vmax.f32 %v2912, 0.0
      %v2916 = vpack.c.bf16 %v2915, %v2915
      %v2917 = vld [vmem:[%s22] sm:$0xf]
      %v2918 = vld [vmem:[%s22 + $0x4] sm:$0xf]
      %v2919 = vld [vmem:[#allocation2] sm:$0x1]
      %v2922 = vunpack.c.l.b16 %v2917
      %v2923 = vunpack.c.l.b16 %v2918
      %v2924 = vpack.c.b16 %v2923, %v2922
      %vm2926 = vcmask 130048
      %v2928 = vsel %vm2926, %v2916, 0
      %2930 = vmatpush.bf16.msra.mxu0 0
      %2931 = vmatpush.bf16.msra.mxu0 0
      %2932 = vmatpush.bf16.msra.mxu0 0
      %2933 = vmatpush.bf16.msra.mxu0 0
      %2934 = vmatpush.bf16.msra.mxu0 0
      %2935 = vmatpush.bf16.msra.mxu0 0
      %2936 = vmatpush.bf16.msra.mxu0 0
      %2937 = vmatpush.bf16.msra.mxu0 %v2924
      %2938 = vmatmul.bf16.gmra.mxu0 %v2928
      %v2939 = vpop.f32.mrf.mxu0
      %v2940 = vadd.f32 %v2919, %v2939
      %v2941 = vpop.f32.mrf.mxu0
      %2942 = vdwg.mxu0
      %v2943 = vmax.f32 %v2940, 0.0
      %vm2944 = vcmask 0
      %2945 = vst.msk [vmem:[%s749] sm:$0x1] %vm2944, %v2943
      %p2946 = scmp.lt.s32.totalorder %s37, 1
      %s2947 = scalar_select %p2946, %s37, 1
      %s2948 = scalar_lea.vmem %s24, %s2947
      // Predicated region
      $region117: #{cnn_forward.1} parent=115 // pred_check
        %p2949 = pneg %p569
      $region118: #{cnn_forward.1} parent=115 // pred_check_branch
        %2951 = sbr.rel (%p2949) target = $region120
      $region119: #{cnn_forward.1} parent=115 // pred_region
        _
      $region120: #{cnn_forward.1} parent=115 // pred_fallthru
        _
    $region116: #{cnn_forward.1} parent=5 // pred_fallthru
      _
    %p2952 = scmp.le.s32.totalorder 2, %s32
    // Predicated region
    $region121: #{cnn_forward.1} parent=5 // pred_check
      %p2953 = pneg %p2952
    $region122: #{cnn_forward.1} parent=5 // pred_check_branch
      %2955 = sbr.rel (%p2953) target = $region124
    $region123: #{cnn_forward.1} parent=5 // pred_region
      %s2956 = ssub.s32 %s32, 2
      // Predicated region
      $region125: #{cnn_forward.1} parent=123 // pred_check
        %p2957 = pneg %p575
      $region126: #{cnn_forward.1} parent=123 // pred_check_branch
        %2959 = sbr.rel (%p2957) target = $region128
      $region127: #{cnn_forward.1} parent=123 // pred_region
        %p2960 = scmp.lt.s32.totalorder %s38, 1
        %s2961 = scalar_select %p2960, %s38, 1
        %s2962 = scalar_lea.vmem %s24, %s2961
      $region128: #{cnn_forward.1} parent=123 // pred_fallthru
        _
    $region124: #{cnn_forward.1} parent=5 // pred_fallthru
      _
  $region6: #{cnn_forward.1} parent=0 // loop_footer
    %s36 = sadd.s32 1, %s32
  $region7: #{cnn_forward.1} parent=0 // loop_footer_branch
    %31 = sbr.rel target = $region3
  $region8: #{cnn_forward.1} parent=0 // loop_exit
    _

</llo_original>
